<compile_context>
chip_gen: v6e
topology: v6e:2x2x1
jax: 0.10.0
libtpu: 0.0.40
codegen_flags: <defaults>
</compile_context>

<pallas_src>
import functools
import math

import jax
import jax.numpy as jnp
from jax.experimental import pallas as pl
from jax.experimental.pallas import tpu as pltpu


# ---------------------------------------------------------------------------
# Fused kernel: channel max/mean + in-kernel padding + KxK conv + sigmoid
# ---------------------------------------------------------------------------
def _spatial_attention_kernel(w_ref, x_ref, o_ref, feat_ref, shift_ref, *,
                              C, H, W, K, BB, WP, L_ACC, N_ACC=4):
    # w_ref     : (2*K*K,)        f32 SMEM  -- conv weight, flat (ci, di, dj)
    # x_ref     : (BB, C, H, W)   VMEM      -- unpadded input block (BB images)
    # o_ref     : (1, H, L_ACC)   f32 VMEM  -- output slab (image j at cols j*WP)
    # feat_ref  : (2, HP, BB*WP)  f32 VMEM  -- zero-padded [max, mean] maps
    # shift_ref : (HP, L_ACC)     f32 VMEM  -- lane-shifted slab for one (ci, dj)
    P = K // 2
    inv_c = 1.0 / C

    # -- [1] in-kernel zero padding: zero once, then write the interior.
    #    Borders of feat stay 0 == Conv2d's zero padding of the 2-ch map.
    feat_ref[...] = jnp.zeros_like(feat_ref)

    # -- [5] vectorized channel max / mean, one image slab at a time.
    for j in range(BB):
        xj = x_ref[j].astype(jnp.float32)                    # (C, H, W)   [11]
        base = j * WP + P
        feat_ref[0, P:P + H, base:base + W] = jnp.max(xj, axis=0)
        feat_ref[1, P:P + H, base:base + W] = jnp.sum(xj, axis=0) * inv_c

    # -- [8] hoist every weight scalar read out of the tap loop.
    wts = [[[w_ref[ci * K * K + di * K + dj] for dj in range(K)]
            for di in range(K)] for ci in range(2)]

    # -- [3] + [9] KxK conv: one lane shift per (ci, dj) (2*K total); the K
    #    row taps per shift read the scratch with sublane offsets only.
    accs = [jnp.zeros((H, L_ACC), jnp.float32) for _ in range(N_ACC)]
    t = 0
    for ci in range(2):
        for dj in range(K):
            # Single lane-shifted copy of the padded slab for this (ci, dj).
            shift_ref[...] = feat_ref[ci, :, dj:dj + L_ACC]
            for di in range(K):
                win = shift_ref[di:di + H, :]        # sublane offset only
                accs[t % N_ACC] = accs[t % N_ACC] + wts[ci][di][dj] * win
                t += 1
    acc = accs[0]
    for a in accs[1:]:
        acc = acc + a
    # NOTE: for realistic feature-map sizes this tap loop should become K
    # banded MXU matmuls (H, WP) @ (WP, W) built from the weights (v6e/v7x).

    # -- [10] sigmoid: exp on the EUP; exact reciprocal for bit-level checks.
    o_ref[0] = pl.reciprocal(1.0 + jnp.exp(-acc), approx=False)


# ---------------------------------------------------------------------------
# Wrapper
# ---------------------------------------------------------------------------
def spatial_attention_forward(x_nchw, weight, *, kernel_size=7,
                              images_per_step=None):
    """SpatialAttention.forward: x [N,C,H,W] -> attention weights [N,1,H,W]."""
    assert kernel_size % 2 == 1, "Kernel size must be odd"
    n, c, h, w = x_nchw.shape
    k = kernel_size
    p = k // 2
    hp, wp = h + 2 * p, w + 2 * p

    # [7] fat grid steps: pack the whole (small) batch into one step by
    # default; set images_per_step for large batches / v7x megacore split.
    bb = n if images_per_step is None else images_per_step
    assert n % bb == 0, "batch must be divisible by images_per_step"
    n_steps = n // bb
    # Valid slab width: image j's output columns live at [j*wp, j*wp + w).
    l_acc = bb * wp - 2 * p

    w_flat = weight.astype(jnp.float32).reshape(-1)          # (2*K*K,)

    kernel = functools.partial(_spatial_attention_kernel,
                               C=c, H=h, W=w, K=k, BB=bb, WP=wp, L_ACC=l_acc)

    out_slab = pl.pallas_call(
        kernel,
        out_shape=jax.ShapeDtypeStruct((n_steps, h, l_acc), jnp.float32),
        grid=(n_steps,),
        in_specs=[
            pl.BlockSpec(memory_space=pltpu.MemorySpace.SMEM),    # weights
            pl.BlockSpec((bb, c, h, w), lambda i: (i, 0, 0, 0)),  # x (unpadded) [1]
        ],
        out_specs=pl.BlockSpec((1, h, l_acc), lambda i: (i, 0, 0)),
        scratch_shapes=[
            pltpu.VMEM((2, hp, bb * wp), jnp.float32),   # padded [max, mean] slab
            pltpu.VMEM((hp, l_acc), jnp.float32),        # lane-shifted slab
        ],
        compiler_params=pltpu.CompilerParams(
            dimension_semantics=("parallel",)),
        # NOTE: for realistic C (256-2048) add a channel-tile grid axis marked
        # "arbitrary" with running max/sum scratch and set vmem_limit_bytes so
        # the double-buffered input block fits v7x's 64 MiB VMEM.
    )(w_flat, x_nchw)

    # [2] layout plumbing back to (N, 1, H, W): image j of step i occupies
    # columns [j*wp, j*wp + w) of out_slab[i].
    per_img = [out_slab[:, :, j * wp:j * wp + w] for j in range(bb)]
    out = jnp.stack(per_img, axis=1).reshape(n, 1, h, w)
    return out


# ---------------------------------------------------------------------------
# Pure-JAX reference (for correctness check)
# ---------------------------------------------------------------------------
def _reference(x, weight):
    mx = jnp.max(x, axis=1, keepdims=True)
    mn = jnp.mean(x, axis=1, keepdims=True)
    feat = jnp.concatenate([mx, mn], axis=1)
    y = jax.lax.conv_general_dilated(
        feat, weight, window_strides=(1, 1), padding="SAME",
        dimension_numbers=("NCHW", "OIHW", "NCHW"),
        precision=jax.lax.Precision.HIGHEST)
    return jax.nn.sigmoid(y)


# ---------------------------------------------------------------------------
if __name__ == "__main__":
    key = jax.random.PRNGKey(0)
    kx, kw = jax.random.split(key)

    # Small shapes consistent with the module: batch=2, channels=4, 16x16.
    N, C, H, W = 2, 4, 16, 16
    K = 7
    x = jax.random.normal(kx, (N, C, H, W), jnp.float32)

    # Conv2d(2, 1, 7, bias=False) weight, Kaiming-uniform-style init.
    fan_in = 2 * K * K
    bound = 1.0 / math.sqrt(fan_in)
    weight = jax.random.uniform(kw, (1, 2, K, K), jnp.float32, -bound, bound)

    out = spatial_attention_forward(x, weight, kernel_size=K)
    out = jax.block_until_ready(out)

    assert out.shape == (N, 1, H, W), out.shape
    assert out.dtype == jnp.float32
    assert bool(jnp.all(jnp.isfinite(out)))

    ref = _reference(x, weight)
    assert bool(jnp.allclose(out, ref, atol=1e-4, rtol=1e-4)), (
        float(jnp.max(jnp.abs(out - ref))))

    print("KERNEL_OK")
</pallas_src>

<mosaic_0001>
module attributes {stable_mosaic.version = 11 : i64} {
  func.func @_spatial_attention_kernel(%arg0: i32, %arg1: memref<98xf32, #tpu.memory_space<smem>>, %arg2: memref<2x4x16x16xf32, #tpu.memory_space<vmem>>, %arg3: memref<1x16x38xf32, #tpu.memory_space<vmem>>, %arg4: memref<2x22x44xf32, #tpu.memory_space<vmem>>, %arg5: memref<22x38xf32, #tpu.memory_space<vmem>>) attributes {dimension_semantics = [#tpu.dimension_semantics<parallel>], iteration_bounds = array<i64: 1>, scalar_prefetch = 0 : i64, scratch_operands = 2 : i64, tpu.core_type = #tpu.core_type<tc>, window_params = [{transform_indices = @transform_0, window_bounds = array<i64: 98>}, {transform_indices = @transform_1, window_bounds = array<i64: 2, 4, 16, 16>}, {transform_indices = @transform_2, window_bounds = array<i64: 1, 16, 38>}]} {
    %cst = arith.constant 0.000000e+00 : f32
    %0 = vector.broadcast %cst : f32 to vector<2x22x44xf32>
    %c0 = arith.constant 0 : index
    %c0_0 = arith.constant 0 : index
    %c0_1 = arith.constant 0 : index
    %1 = vector.load %arg4[%c0, %c0_0, %c0_1] : memref<2x22x44xf32, #tpu.memory_space<vmem>>, vector<2x22x44xf32>
    tpu.vector_store %arg4[%c0, %c0_0, %c0_1], %0 {strides = array<i32>} : memref<2x22x44xf32, #tpu.memory_space<vmem>>, vector<2x22x44xf32>,
    %c0_2 = arith.constant 0 : index
    %c0_3 = arith.constant 0 : index
    %c0_4 = arith.constant 0 : index
    %c0_5 = arith.constant 0 : index
    %2 = vector.load %arg2[%c0_2, %c0_3, %c0_4, %c0_5] : memref<2x4x16x16xf32, #tpu.memory_space<vmem>>, vector<1x4x16x16xf32>
    %3 = vector.shape_cast %2 : vector<1x4x16x16xf32> to vector<4x16x16xf32>
    %cst_6 = arith.constant dense<0xFF800000> : vector<16x16xf32>
    %4 = vector.multi_reduction <maximumf>, %3, %cst_6 [0] : vector<4x16x16xf32> to vector<16x16xf32>
    %c0_7 = arith.constant 0 : index
    %c3 = arith.constant 3 : index
    %c3_8 = arith.constant 3 : index
    %5 = vector.load %arg4[%c0_7, %c3, %c3_8] : memref<2x22x44xf32, #tpu.memory_space<vmem>>, vector<1x16x16xf32>
    %6 = vector.shape_cast %5 : vector<1x16x16xf32> to vector<16x16xf32>
    %7 = vector.shape_cast %4 : vector<16x16xf32> to vector<1x16x16xf32>
    tpu.vector_store %arg4[%c0_7, %c3, %c3_8], %7 {strides = array<i32>} : memref<2x22x44xf32, #tpu.memory_space<vmem>>, vector<1x16x16xf32>,
    %cst_9 = arith.constant dense<0.000000e+00> : vector<16x16xf32>
    %8 = vector.multi_reduction <add>, %3, %cst_9 [0] : vector<4x16x16xf32> to vector<16x16xf32>
    %cst_10 = arith.constant 2.500000e-01 : f32
    %9 = vector.broadcast %cst_10 : f32 to vector<16x16xf32>
    %10 = arith.mulf %8, %9 : vector<16x16xf32>
    %c1 = arith.constant 1 : index
    %c3_11 = arith.constant 3 : index
    %c3_12 = arith.constant 3 : index
    %11 = vector.load %arg4[%c1, %c3_11, %c3_12] : memref<2x22x44xf32, #tpu.memory_space<vmem>>, vector<1x16x16xf32>
    %12 = vector.shape_cast %11 : vector<1x16x16xf32> to vector<16x16xf32>
    %13 = vector.shape_cast %10 : vector<16x16xf32> to vector<1x16x16xf32>
    tpu.vector_store %arg4[%c1, %c3_11, %c3_12], %13 {strides = array<i32>} : memref<2x22x44xf32, #tpu.memory_space<vmem>>, vector<1x16x16xf32>,
    %c1_13 = arith.constant 1 : index
    %c0_14 = arith.constant 0 : index
    %c0_15 = arith.constant 0 : index
    %c0_16 = arith.constant 0 : index
    %14 = vector.load %arg2[%c1_13, %c0_14, %c0_15, %c0_16] : memref<2x4x16x16xf32, #tpu.memory_space<vmem>>, vector<1x4x16x16xf32>
    %15 = vector.shape_cast %14 : vector<1x4x16x16xf32> to vector<4x16x16xf32>
    %cst_17 = arith.constant dense<0xFF800000> : vector<16x16xf32>
    %16 = vector.multi_reduction <maximumf>, %15, %cst_17 [0] : vector<4x16x16xf32> to vector<16x16xf32>
    %c0_18 = arith.constant 0 : index
    %c3_19 = arith.constant 3 : index
    %c25 = arith.constant 25 : index
    %17 = vector.load %arg4[%c0_18, %c3_19, %c25] : memref<2x22x44xf32, #tpu.memory_space<vmem>>, vector<1x16x16xf32>
    %18 = vector.shape_cast %17 : vector<1x16x16xf32> to vector<16x16xf32>
    %19 = vector.shape_cast %16 : vector<16x16xf32> to vector<1x16x16xf32>
    tpu.vector_store %arg4[%c0_18, %c3_19, %c25], %19 {strides = array<i32>} : memref<2x22x44xf32, #tpu.memory_space<vmem>>, vector<1x16x16xf32>,
    %cst_20 = arith.constant dense<0.000000e+00> : vector<16x16xf32>
    %20 = vector.multi_reduction <add>, %15, %cst_20 [0] : vector<4x16x16xf32> to vector<16x16xf32>
    %cst_21 = arith.constant 2.500000e-01 : f32
    %21 = vector.broadcast %cst_21 : f32 to vector<16x16xf32>
    %22 = arith.mulf %20, %21 : vector<16x16xf32>
    %c1_22 = arith.constant 1 : index
    %c3_23 = arith.constant 3 : index
    %c25_24 = arith.constant 25 : index
    %23 = vector.load %arg4[%c1_22, %c3_23, %c25_24] : memref<2x22x44xf32, #tpu.memory_space<vmem>>, vector<1x16x16xf32>
    %24 = vector.shape_cast %23 : vector<1x16x16xf32> to vector<16x16xf32>
    %25 = vector.shape_cast %22 : vector<16x16xf32> to vector<1x16x16xf32>
    tpu.vector_store %arg4[%c1_22, %c3_23, %c25_24], %25 {strides = array<i32>} : memref<2x22x44xf32, #tpu.memory_space<vmem>>, vector<1x16x16xf32>,
    %c0_25 = arith.constant 0 : index
    %26 = memref.load %arg1[%c0_25] : memref<98xf32, #tpu.memory_space<smem>>
    %c1_26 = arith.constant 1 : index
    %27 = memref.load %arg1[%c1_26] : memref<98xf32, #tpu.memory_space<smem>>
    %c2 = arith.constant 2 : index
    %28 = memref.load %arg1[%c2] : memref<98xf32, #tpu.memory_space<smem>>
    %c3_27 = arith.constant 3 : index
    %29 = memref.load %arg1[%c3_27] : memref<98xf32, #tpu.memory_space<smem>>
    %c4 = arith.constant 4 : index
    %30 = memref.load %arg1[%c4] : memref<98xf32, #tpu.memory_space<smem>>
    %c5 = arith.constant 5 : index
    %31 = memref.load %arg1[%c5] : memref<98xf32, #tpu.memory_space<smem>>
    %c6 = arith.constant 6 : index
    %32 = memref.load %arg1[%c6] : memref<98xf32, #tpu.memory_space<smem>>
    %c7 = arith.constant 7 : index
    %33 = memref.load %arg1[%c7] : memref<98xf32, #tpu.memory_space<smem>>
    %c8 = arith.constant 8 : index
    %34 = memref.load %arg1[%c8] : memref<98xf32, #tpu.memory_space<smem>>
    %c9 = arith.constant 9 : index
    %35 = memref.load %arg1[%c9] : memref<98xf32, #tpu.memory_space<smem>>
    %c10 = arith.constant 10 : index
    %36 = memref.load %arg1[%c10] : memref<98xf32, #tpu.memory_space<smem>>
    %c11 = arith.constant 11 : index
    %37 = memref.load %arg1[%c11] : memref<98xf32, #tpu.memory_space<smem>>
    %c12 = arith.constant 12 : index
    %38 = memref.load %arg1[%c12] : memref<98xf32, #tpu.memory_space<smem>>
    %c13 = arith.constant 13 : index
    %39 = memref.load %arg1[%c13] : memref<98xf32, #tpu.memory_space<smem>>
    %c14 = arith.constant 14 : index
    %40 = memref.load %arg1[%c14] : memref<98xf32, #tpu.memory_space<smem>>
    %c15 = arith.constant 15 : index
    %41 = memref.load %arg1[%c15] : memref<98xf32, #tpu.memory_space<smem>>
    %c16 = arith.constant 16 : index
    %42 = memref.load %arg1[%c16] : memref<98xf32, #tpu.memory_space<smem>>
    %c17 = arith.constant 17 : index
    %43 = memref.load %arg1[%c17] : memref<98xf32, #tpu.memory_space<smem>>
    %c18 = arith.constant 18 : index
    %44 = memref.load %arg1[%c18] : memref<98xf32, #tpu.memory_space<smem>>
    %c19 = arith.constant 19 : index
    %45 = memref.load %arg1[%c19] : memref<98xf32, #tpu.memory_space<smem>>
    %c20 = arith.constant 20 : index
    %46 = memref.load %arg1[%c20] : memref<98xf32, #tpu.memory_space<smem>>
    %c21 = arith.constant 21 : index
    %47 = memref.load %arg1[%c21] : memref<98xf32, #tpu.memory_space<smem>>
    %c22 = arith.constant 22 : index
    %48 = memref.load %arg1[%c22] : memref<98xf32, #tpu.memory_space<smem>>
    %c23 = arith.constant 23 : index
    %49 = memref.load %arg1[%c23] : memref<98xf32, #tpu.memory_space<smem>>
    %c24 = arith.constant 24 : index
    %50 = memref.load %arg1[%c24] : memref<98xf32, #tpu.memory_space<smem>>
    %c25_28 = arith.constant 25 : index
    %51 = memref.load %arg1[%c25_28] : memref<98xf32, #tpu.memory_space<smem>>
    %c26 = arith.constant 26 : index
    %52 = memref.load %arg1[%c26] : memref<98xf32, #tpu.memory_space<smem>>
    %c27 = arith.constant 27 : index
    %53 = memref.load %arg1[%c27] : memref<98xf32, #tpu.memory_space<smem>>
    %c28 = arith.constant 28 : index
    %54 = memref.load %arg1[%c28] : memref<98xf32, #tpu.memory_space<smem>>
    %c29 = arith.constant 29 : index
    %55 = memref.load %arg1[%c29] : memref<98xf32, #tpu.memory_space<smem>>
    %c30 = arith.constant 30 : index
    %56 = memref.load %arg1[%c30] : memref<98xf32, #tpu.memory_space<smem>>
    %c31 = arith.constant 31 : index
    %57 = memref.load %arg1[%c31] : memref<98xf32, #tpu.memory_space<smem>>
    %c32 = arith.constant 32 : index
    %58 = memref.load %arg1[%c32] : memref<98xf32, #tpu.memory_space<smem>>
    %c33 = arith.constant 33 : index
    %59 = memref.load %arg1[%c33] : memref<98xf32, #tpu.memory_space<smem>>
    %c34 = arith.constant 34 : index
    %60 = memref.load %arg1[%c34] : memref<98xf32, #tpu.memory_space<smem>>
    %c35 = arith.constant 35 : index
    %61 = memref.load %arg1[%c35] : memref<98xf32, #tpu.memory_space<smem>>
    %c36 = arith.constant 36 : index
    %62 = memref.load %arg1[%c36] : memref<98xf32, #tpu.memory_space<smem>>
    %c37 = arith.constant 37 : index
    %63 = memref.load %arg1[%c37] : memref<98xf32, #tpu.memory_space<smem>>
    %c38 = arith.constant 38 : index
    %64 = memref.load %arg1[%c38] : memref<98xf32, #tpu.memory_space<smem>>
    %c39 = arith.constant 39 : index
    %65 = memref.load %arg1[%c39] : memref<98xf32, #tpu.memory_space<smem>>
    %c40 = arith.constant 40 : index
    %66 = memref.load %arg1[%c40] : memref<98xf32, #tpu.memory_space<smem>>
    %c41 = arith.constant 41 : index
    %67 = memref.load %arg1[%c41] : memref<98xf32, #tpu.memory_space<smem>>
    %c42 = arith.constant 42 : index
    %68 = memref.load %arg1[%c42] : memref<98xf32, #tpu.memory_space<smem>>
    %c43 = arith.constant 43 : index
    %69 = memref.load %arg1[%c43] : memref<98xf32, #tpu.memory_space<smem>>
    %c44 = arith.constant 44 : index
    %70 = memref.load %arg1[%c44] : memref<98xf32, #tpu.memory_space<smem>>
    %c45 = arith.constant 45 : index
    %71 = memref.load %arg1[%c45] : memref<98xf32, #tpu.memory_space<smem>>
    %c46 = arith.constant 46 : index
    %72 = memref.load %arg1[%c46] : memref<98xf32, #tpu.memory_space<smem>>
    %c47 = arith.constant 47 : index
    %73 = memref.load %arg1[%c47] : memref<98xf32, #tpu.memory_space<smem>>
    %c48 = arith.constant 48 : index
    %74 = memref.load %arg1[%c48] : memref<98xf32, #tpu.memory_space<smem>>
    %c49 = arith.constant 49 : index
    %75 = memref.load %arg1[%c49] : memref<98xf32, #tpu.memory_space<smem>>
    %c50 = arith.constant 50 : index
    %76 = memref.load %arg1[%c50] : memref<98xf32, #tpu.memory_space<smem>>
    %c51 = arith.constant 51 : index
    %77 = memref.load %arg1[%c51] : memref<98xf32, #tpu.memory_space<smem>>
    %c52 = arith.constant 52 : index
    %78 = memref.load %arg1[%c52] : memref<98xf32, #tpu.memory_space<smem>>
    %c53 = arith.constant 53 : index
    %79 = memref.load %arg1[%c53] : memref<98xf32, #tpu.memory_space<smem>>
    %c54 = arith.constant 54 : index
    %80 = memref.load %arg1[%c54] : memref<98xf32, #tpu.memory_space<smem>>
    %c55 = arith.constant 55 : index
    %81 = memref.load %arg1[%c55] : memref<98xf32, #tpu.memory_space<smem>>
    %c56 = arith.constant 56 : index
    %82 = memref.load %arg1[%c56] : memref<98xf32, #tpu.memory_space<smem>>
    %c57 = arith.constant 57 : index
    %83 = memref.load %arg1[%c57] : memref<98xf32, #tpu.memory_space<smem>>
    %c58 = arith.constant 58 : index
    %84 = memref.load %arg1[%c58] : memref<98xf32, #tpu.memory_space<smem>>
    %c59 = arith.constant 59 : index
    %85 = memref.load %arg1[%c59] : memref<98xf32, #tpu.memory_space<smem>>
    %c60 = arith.constant 60 : index
    %86 = memref.load %arg1[%c60] : memref<98xf32, #tpu.memory_space<smem>>
    %c61 = arith.constant 61 : index
    %87 = memref.load %arg1[%c61] : memref<98xf32, #tpu.memory_space<smem>>
    %c62 = arith.constant 62 : index
    %88 = memref.load %arg1[%c62] : memref<98xf32, #tpu.memory_space<smem>>
    %c63 = arith.constant 63 : index
    %89 = memref.load %arg1[%c63] : memref<98xf32, #tpu.memory_space<smem>>
    %c64 = arith.constant 64 : index
    %90 = memref.load %arg1[%c64] : memref<98xf32, #tpu.memory_space<smem>>
    %c65 = arith.constant 65 : index
    %91 = memref.load %arg1[%c65] : memref<98xf32, #tpu.memory_space<smem>>
    %c66 = arith.constant 66 : index
    %92 = memref.load %arg1[%c66] : memref<98xf32, #tpu.memory_space<smem>>
    %c67 = arith.constant 67 : index
    %93 = memref.load %arg1[%c67] : memref<98xf32, #tpu.memory_space<smem>>
    %c68 = arith.constant 68 : index
    %94 = memref.load %arg1[%c68] : memref<98xf32, #tpu.memory_space<smem>>
    %c69 = arith.constant 69 : index
    %95 = memref.load %arg1[%c69] : memref<98xf32, #tpu.memory_space<smem>>
    %c70 = arith.constant 70 : index
    %96 = memref.load %arg1[%c70] : memref<98xf32, #tpu.memory_space<smem>>
    %c71 = arith.constant 71 : index
    %97 = memref.load %arg1[%c71] : memref<98xf32, #tpu.memory_space<smem>>
    %c72 = arith.constant 72 : index
    %98 = memref.load %arg1[%c72] : memref<98xf32, #tpu.memory_space<smem>>
    %c73 = arith.constant 73 : index
    %99 = memref.load %arg1[%c73] : memref<98xf32, #tpu.memory_space<smem>>
    %c74 = arith.constant 74 : index
    %100 = memref.load %arg1[%c74] : memref<98xf32, #tpu.memory_space<smem>>
    %c75 = arith.constant 75 : index
    %101 = memref.load %arg1[%c75] : memref<98xf32, #tpu.memory_space<smem>>
    %c76 = arith.constant 76 : index
    %102 = memref.load %arg1[%c76] : memref<98xf32, #tpu.memory_space<smem>>
    %c77 = arith.constant 77 : index
    %103 = memref.load %arg1[%c77] : memref<98xf32, #tpu.memory_space<smem>>
    %c78 = arith.constant 78 : index
    %104 = memref.load %arg1[%c78] : memref<98xf32, #tpu.memory_space<smem>>
    %c79 = arith.constant 79 : index
    %105 = memref.load %arg1[%c79] : memref<98xf32, #tpu.memory_space<smem>>
    %c80 = arith.constant 80 : index
    %106 = memref.load %arg1[%c80] : memref<98xf32, #tpu.memory_space<smem>>
    %c81 = arith.constant 81 : index
    %107 = memref.load %arg1[%c81] : memref<98xf32, #tpu.memory_space<smem>>
    %c82 = arith.constant 82 : index
    %108 = memref.load %arg1[%c82] : memref<98xf32, #tpu.memory_space<smem>>
    %c83 = arith.constant 83 : index
    %109 = memref.load %arg1[%c83] : memref<98xf32, #tpu.memory_space<smem>>
    %c84 = arith.constant 84 : index
    %110 = memref.load %arg1[%c84] : memref<98xf32, #tpu.memory_space<smem>>
    %c85 = arith.constant 85 : index
    %111 = memref.load %arg1[%c85] : memref<98xf32, #tpu.memory_space<smem>>
    %c86 = arith.constant 86 : index
    %112 = memref.load %arg1[%c86] : memref<98xf32, #tpu.memory_space<smem>>
    %c87 = arith.constant 87 : index
    %113 = memref.load %arg1[%c87] : memref<98xf32, #tpu.memory_space<smem>>
    %c88 = arith.constant 88 : index
    %114 = memref.load %arg1[%c88] : memref<98xf32, #tpu.memory_space<smem>>
    %c89 = arith.constant 89 : index
    %115 = memref.load %arg1[%c89] : memref<98xf32, #tpu.memory_space<smem>>
    %c90 = arith.constant 90 : index
    %116 = memref.load %arg1[%c90] : memref<98xf32, #tpu.memory_space<smem>>
    %c91 = arith.constant 91 : index
    %117 = memref.load %arg1[%c91] : memref<98xf32, #tpu.memory_space<smem>>
    %c92 = arith.constant 92 : index
    %118 = memref.load %arg1[%c92] : memref<98xf32, #tpu.memory_space<smem>>
    %c93 = arith.constant 93 : index
    %119 = memref.load %arg1[%c93] : memref<98xf32, #tpu.memory_space<smem>>
    %c94 = arith.constant 94 : index
    %120 = memref.load %arg1[%c94] : memref<98xf32, #tpu.memory_space<smem>>
    %c95 = arith.constant 95 : index
    %121 = memref.load %arg1[%c95] : memref<98xf32, #tpu.memory_space<smem>>
    %c96 = arith.constant 96 : index
    %122 = memref.load %arg1[%c96] : memref<98xf32, #tpu.memory_space<smem>>
    %c97 = arith.constant 97 : index
    %123 = memref.load %arg1[%c97] : memref<98xf32, #tpu.memory_space<smem>>
    %cst_29 = arith.constant 0.000000e+00 : f32
    %124 = vector.broadcast %cst_29 : f32 to vector<16x38xf32>
    %cst_30 = arith.constant 0.000000e+00 : f32
    %125 = vector.broadcast %cst_30 : f32 to vector<16x38xf32>
    %cst_31 = arith.constant 0.000000e+00 : f32
    %126 = vector.broadcast %cst_31 : f32 to vector<16x38xf32>
    %cst_32 = arith.constant 0.000000e+00 : f32
    %127 = vector.broadcast %cst_32 : f32 to vector<16x38xf32>
    %c0_33 = arith.constant 0 : index
    %c0_34 = arith.constant 0 : index
    %c0_35 = arith.constant 0 : index
    %128 = vector.load %arg4[%c0_33, %c0_34, %c0_35] : memref<2x22x44xf32, #tpu.memory_space<vmem>>, vector<1x22x38xf32>
    %129 = vector.shape_cast %128 : vector<1x22x38xf32> to vector<22x38xf32>
    %c0_36 = arith.constant 0 : index
    %c0_37 = arith.constant 0 : index
    %130 = vector.load %arg5[%c0_36, %c0_37] : memref<22x38xf32, #tpu.memory_space<vmem>>, vector<22x38xf32>
    tpu.vector_store %arg5[%c0_36, %c0_37], %129 {strides = array<i32>} : memref<22x38xf32, #tpu.memory_space<vmem>>, vector<22x38xf32>,
    %c0_38 = arith.constant 0 : index
    %c0_39 = arith.constant 0 : index
    %131 = vector.load %arg5[%c0_38, %c0_39] : memref<22x38xf32, #tpu.memory_space<vmem>>, vector<16x38xf32>
    %132 = vector.broadcast %26 : f32 to vector<16x38xf32>
    %133 = arith.mulf %132, %131 : vector<16x38xf32>
    %134 = arith.addf %124, %133 : vector<16x38xf32>
    %c1_40 = arith.constant 1 : index
    %c0_41 = arith.constant 0 : index
    %135 = vector.load %arg5[%c1_40, %c0_41] : memref<22x38xf32, #tpu.memory_space<vmem>>, vector<16x38xf32>
    %136 = vector.broadcast %33 : f32 to vector<16x38xf32>
    %137 = arith.mulf %136, %135 : vector<16x38xf32>
    %138 = arith.addf %125, %137 : vector<16x38xf32>
    %c2_42 = arith.constant 2 : index
    %c0_43 = arith.constant 0 : index
    %139 = vector.load %arg5[%c2_42, %c0_43] : memref<22x38xf32, #tpu.memory_space<vmem>>, vector<16x38xf32>
    %140 = vector.broadcast %40 : f32 to vector<16x38xf32>
    %141 = arith.mulf %140, %139 : vector<16x38xf32>
    %142 = arith.addf %126, %141 : vector<16x38xf32>
    %c3_44 = arith.constant 3 : index
    %c0_45 = arith.constant 0 : index
    %143 = vector.load %arg5[%c3_44, %c0_45] : memref<22x38xf32, #tpu.memory_space<vmem>>, vector<16x38xf32>
    %144 = vector.broadcast %47 : f32 to vector<16x38xf32>
    %145 = arith.mulf %144, %143 : vector<16x38xf32>
    %146 = arith.addf %127, %145 : vector<16x38xf32>
    %c4_46 = arith.constant 4 : index
    %c0_47 = arith.constant 0 : index
    %147 = vector.load %arg5[%c4_46, %c0_47] : memref<22x38xf32, #tpu.memory_space<vmem>>, vector<16x38xf32>
    %148 = vector.broadcast %54 : f32 to vector<16x38xf32>
    %149 = arith.mulf %148, %147 : vector<16x38xf32>
    %150 = arith.addf %134, %149 : vector<16x38xf32>
    %c5_48 = arith.constant 5 : index
    %c0_49 = arith.constant 0 : index
    %151 = vector.load %arg5[%c5_48, %c0_49] : memref<22x38xf32, #tpu.memory_space<vmem>>, vector<16x38xf32>
    %152 = vector.broadcast %61 : f32 to vector<16x38xf32>
    %153 = arith.mulf %152, %151 : vector<16x38xf32>
    %154 = arith.addf %138, %153 : vector<16x38xf32>
    %c6_50 = arith.constant 6 : index
    %c0_51 = arith.constant 0 : index
    %155 = vector.load %arg5[%c6_50, %c0_51] : memref<22x38xf32, #tpu.memory_space<vmem>>, vector<16x38xf32>
    %156 = vector.broadcast %68 : f32 to vector<16x38xf32>
    %157 = arith.mulf %156, %155 : vector<16x38xf32>
    %158 = arith.addf %142, %157 : vector<16x38xf32>
    %c0_52 = arith.constant 0 : index
    %c0_53 = arith.constant 0 : index
    %c1_54 = arith.constant 1 : index
    %159 = vector.load %arg4[%c0_52, %c0_53, %c1_54] : memref<2x22x44xf32, #tpu.memory_space<vmem>>, vector<1x22x38xf32>
    %160 = vector.shape_cast %159 : vector<1x22x38xf32> to vector<22x38xf32>
    %c0_55 = arith.constant 0 : index
    %c0_56 = arith.constant 0 : index
    %161 = vector.load %arg5[%c0_55, %c0_56] : memref<22x38xf32, #tpu.memory_space<vmem>>, vector<22x38xf32>
    tpu.vector_store %arg5[%c0_55, %c0_56], %160 {strides = array<i32>} : memref<22x38xf32, #tpu.memory_space<vmem>>, vector<22x38xf32>,
    %c0_57 = arith.constant 0 : index
    %c0_58 = arith.constant 0 : index
    %162 = vector.load %arg5[%c0_57, %c0_58] : memref<22x38xf32, #tpu.memory_space<vmem>>, vector<16x38xf32>
    %163 = vector.broadcast %27 : f32 to vector<16x38xf32>
    %164 = arith.mulf %163, %162 : vector<16x38xf32>
    %165 = arith.addf %146, %164 : vector<16x38xf32>
    %c1_59 = arith.constant 1 : index
    %c0_60 = arith.constant 0 : index
    %166 = vector.load %arg5[%c1_59, %c0_60] : memref<22x38xf32, #tpu.memory_space<vmem>>, vector<16x38xf32>
    %167 = vector.broadcast %34 : f32 to vector<16x38xf32>
    %168 = arith.mulf %167, %166 : vector<16x38xf32>
    %169 = arith.addf %150, %168 : vector<16x38xf32>
    %c2_61 = arith.constant 2 : index
    %c0_62 = arith.constant 0 : index
    %170 = vector.load %arg5[%c2_61, %c0_62] : memref<22x38xf32, #tpu.memory_space<vmem>>, vector<16x38xf32>
    %171 = vector.broadcast %41 : f32 to vector<16x38xf32>
    %172 = arith.mulf %171, %170 : vector<16x38xf32>
    %173 = arith.addf %154, %172 : vector<16x38xf32>
    %c3_63 = arith.constant 3 : index
    %c0_64 = arith.constant 0 : index
    %174 = vector.load %arg5[%c3_63, %c0_64] : memref<22x38xf32, #tpu.memory_space<vmem>>, vector<16x38xf32>
    %175 = vector.broadcast %48 : f32 to vector<16x38xf32>
    %176 = arith.mulf %175, %174 : vector<16x38xf32>
    %177 = arith.addf %158, %176 : vector<16x38xf32>
    %c4_65 = arith.constant 4 : index
    %c0_66 = arith.constant 0 : index
    %178 = vector.load %arg5[%c4_65, %c0_66] : memref<22x38xf32, #tpu.memory_space<vmem>>, vector<16x38xf32>
    %179 = vector.broadcast %55 : f32 to vector<16x38xf32>
    %180 = arith.mulf %179, %178 : vector<16x38xf32>
    %181 = arith.addf %165, %180 : vector<16x38xf32>
    %c5_67 = arith.constant 5 : index
    %c0_68 = arith.constant 0 : index
    %182 = vector.load %arg5[%c5_67, %c0_68] : memref<22x38xf32, #tpu.memory_space<vmem>>, vector<16x38xf32>
    %183 = vector.broadcast %62 : f32 to vector<16x38xf32>
    %184 = arith.mulf %183, %182 : vector<16x38xf32>
    %185 = arith.addf %169, %184 : vector<16x38xf32>
    %c6_69 = arith.constant 6 : index
    %c0_70 = arith.constant 0 : index
    %186 = vector.load %arg5[%c6_69, %c0_70] : memref<22x38xf32, #tpu.memory_space<vmem>>, vector<16x38xf32>
    %187 = vector.broadcast %69 : f32 to vector<16x38xf32>
    %188 = arith.mulf %187, %186 : vector<16x38xf32>
    %189 = arith.addf %173, %188 : vector<16x38xf32>
    %c0_71 = arith.constant 0 : index
    %c0_72 = arith.constant 0 : index
    %c2_73 = arith.constant 2 : index
    %190 = vector.load %arg4[%c0_71, %c0_72, %c2_73] : memref<2x22x44xf32, #tpu.memory_space<vmem>>, vector<1x22x38xf32>
    %191 = vector.shape_cast %190 : vector<1x22x38xf32> to vector<22x38xf32>
    %c0_74 = arith.constant 0 : index
    %c0_75 = arith.constant 0 : index
    %192 = vector.load %arg5[%c0_74, %c0_75] : memref<22x38xf32, #tpu.memory_space<vmem>>, vector<22x38xf32>
    tpu.vector_store %arg5[%c0_74, %c0_75], %191 {strides = array<i32>} : memref<22x38xf32, #tpu.memory_space<vmem>>, vector<22x38xf32>,
    %c0_76 = arith.constant 0 : index
    %c0_77 = arith.constant 0 : index
    %193 = vector.load %arg5[%c0_76, %c0_77] : memref<22x38xf32, #tpu.memory_space<vmem>>, vector<16x38xf32>
    %194 = vector.broadcast %28 : f32 to vector<16x38xf32>
    %195 = arith.mulf %194, %193 : vector<16x38xf32>
    %196 = arith.addf %177, %195 : vector<16x38xf32>
    %c1_78 = arith.constant 1 : index
    %c0_79 = arith.constant 0 : index
    %197 = vector.load %arg5[%c1_78, %c0_79] : memref<22x38xf32, #tpu.memory_space<vmem>>, vector<16x38xf32>
    %198 = vector.broadcast %35 : f32 to vector<16x38xf32>
    %199 = arith.mulf %198, %197 : vector<16x38xf32>
    %200 = arith.addf %181, %199 : vector<16x38xf32>
    %c2_80 = arith.constant 2 : index
    %c0_81 = arith.constant 0 : index
    %201 = vector.load %arg5[%c2_80, %c0_81] : memref<22x38xf32, #tpu.memory_space<vmem>>, vector<16x38xf32>
    %202 = vector.broadcast %42 : f32 to vector<16x38xf32>
    %203 = arith.mulf %202, %201 : vector<16x38xf32>
    %204 = arith.addf %185, %203 : vector<16x38xf32>
    %c3_82 = arith.constant 3 : index
    %c0_83 = arith.constant 0 : index
    %205 = vector.load %arg5[%c3_82, %c0_83] : memref<22x38xf32, #tpu.memory_space<vmem>>, vector<16x38xf32>
    %206 = vector.broadcast %49 : f32 to vector<16x38xf32>
    %207 = arith.mulf %206, %205 : vector<16x38xf32>
    %208 = arith.addf %189, %207 : vector<16x38xf32>
    %c4_84 = arith.constant 4 : index
    %c0_85 = arith.constant 0 : index
    %209 = vector.load %arg5[%c4_84, %c0_85] : memref<22x38xf32, #tpu.memory_space<vmem>>, vector<16x38xf32>
    %210 = vector.broadcast %56 : f32 to vector<16x38xf32>
    %211 = arith.mulf %210, %209 : vector<16x38xf32>
    %212 = arith.addf %196, %211 : vector<16x38xf32>
    %c5_86 = arith.constant 5 : index
    %c0_87 = arith.constant 0 : index
    %213 = vector.load %arg5[%c5_86, %c0_87] : memref<22x38xf32, #tpu.memory_space<vmem>>, vector<16x38xf32>
    %214 = vector.broadcast %63 : f32 to vector<16x38xf32>
    %215 = arith.mulf %214, %213 : vector<16x38xf32>
    %216 = arith.addf %200, %215 : vector<16x38xf32>
    %c6_88 = arith.constant 6 : index
    %c0_89 = arith.constant 0 : index
    %217 = vector.load %arg5[%c6_88, %c0_89] : memref<22x38xf32, #tpu.memory_space<vmem>>, vector<16x38xf32>
    %218 = vector.broadcast %70 : f32 to vector<16x38xf32>
    %219 = arith.mulf %218, %217 : vector<16x38xf32>
    %220 = arith.addf %204, %219 : vector<16x38xf32>
    %c0_90 = arith.constant 0 : index
    %c0_91 = arith.constant 0 : index
    %c3_92 = arith.constant 3 : index
    %221 = vector.load %arg4[%c0_90, %c0_91, %c3_92] : memref<2x22x44xf32, #tpu.memory_space<vmem>>, vector<1x22x38xf32>
    %222 = vector.shape_cast %221 : vector<1x22x38xf32> to vector<22x38xf32>
    %c0_93 = arith.constant 0 : index
    %c0_94 = arith.constant 0 : index
    %223 = vector.load %arg5[%c0_93, %c0_94] : memref<22x38xf32, #tpu.memory_space<vmem>>, vector<22x38xf32>
    tpu.vector_store %arg5[%c0_93, %c0_94], %222 {strides = array<i32>} : memref<22x38xf32, #tpu.memory_space<vmem>>, vector<22x38xf32>,
    %c0_95 = arith.constant 0 : index
    %c0_96 = arith.constant 0 : index
    %224 = vector.load %arg5[%c0_95, %c0_96] : memref<22x38xf32, #tpu.memory_space<vmem>>, vector<16x38xf32>
    %225 = vector.broadcast %29 : f32 to vector<16x38xf32>
    %226 = arith.mulf %225, %224 : vector<16x38xf32>
    %227 = arith.addf %208, %226 : vector<16x38xf32>
    %c1_97 = arith.constant 1 : index
    %c0_98 = arith.constant 0 : index
    %228 = vector.load %arg5[%c1_97, %c0_98] : memref<22x38xf32, #tpu.memory_space<vmem>>, vector<16x38xf32>
    %229 = vector.broadcast %36 : f32 to vector<16x38xf32>
    %230 = arith.mulf %229, %228 : vector<16x38xf32>
    %231 = arith.addf %212, %230 : vector<16x38xf32>
    %c2_99 = arith.constant 2 : index
    %c0_100 = arith.constant 0 : index
    %232 = vector.load %arg5[%c2_99, %c0_100] : memref<22x38xf32, #tpu.memory_space<vmem>>, vector<16x38xf32>
    %233 = vector.broadcast %43 : f32 to vector<16x38xf32>
    %234 = arith.mulf %233, %232 : vector<16x38xf32>
    %235 = arith.addf %216, %234 : vector<16x38xf32>
    %c3_101 = arith.constant 3 : index
    %c0_102 = arith.constant 0 : index
    %236 = vector.load %arg5[%c3_101, %c0_102] : memref<22x38xf32, #tpu.memory_space<vmem>>, vector<16x38xf32>
    %237 = vector.broadcast %50 : f32 to vector<16x38xf32>
    %238 = arith.mulf %237, %236 : vector<16x38xf32>
    %239 = arith.addf %220, %238 : vector<16x38xf32>
    %c4_103 = arith.constant 4 : index
    %c0_104 = arith.constant 0 : index
    %240 = vector.load %arg5[%c4_103, %c0_104] : memref<22x38xf32, #tpu.memory_space<vmem>>, vector<16x38xf32>
    %241 = vector.broadcast %57 : f32 to vector<16x38xf32>
    %242 = arith.mulf %241, %240 : vector<16x38xf32>
    %243 = arith.addf %227, %242 : vector<16x38xf32>
    %c5_105 = arith.constant 5 : index
    %c0_106 = arith.constant 0 : index
    %244 = vector.load %arg5[%c5_105, %c0_106] : memref<22x38xf32, #tpu.memory_space<vmem>>, vector<16x38xf32>
    %245 = vector.broadcast %64 : f32 to vector<16x38xf32>
    %246 = arith.mulf %245, %244 : vector<16x38xf32>
    %247 = arith.addf %231, %246 : vector<16x38xf32>
    %c6_107 = arith.constant 6 : index
    %c0_108 = arith.constant 0 : index
    %248 = vector.load %arg5[%c6_107, %c0_108] : memref<22x38xf32, #tpu.memory_space<vmem>>, vector<16x38xf32>
    %249 = vector.broadcast %71 : f32 to vector<16x38xf32>
    %250 = arith.mulf %249, %248 : vector<16x38xf32>
    %251 = arith.addf %235, %250 : vector<16x38xf32>
    %c0_109 = arith.constant 0 : index
    %c0_110 = arith.constant 0 : index
    %c4_111 = arith.constant 4 : index
    %252 = vector.load %arg4[%c0_109, %c0_110, %c4_111] : memref<2x22x44xf32, #tpu.memory_space<vmem>>, vector<1x22x38xf32>
    %253 = vector.shape_cast %252 : vector<1x22x38xf32> to vector<22x38xf32>
    %c0_112 = arith.constant 0 : index
    %c0_113 = arith.constant 0 : index
    %254 = vector.load %arg5[%c0_112, %c0_113] : memref<22x38xf32, #tpu.memory_space<vmem>>, vector<22x38xf32>
    tpu.vector_store %arg5[%c0_112, %c0_113], %253 {strides = array<i32>} : memref<22x38xf32, #tpu.memory_space<vmem>>, vector<22x38xf32>,
    %c0_114 = arith.constant 0 : index
    %c0_115 = arith.constant 0 : index
    %255 = vector.load %arg5[%c0_114, %c0_115] : memref<22x38xf32, #tpu.memory_space<vmem>>, vector<16x38xf32>
    %256 = vector.broadcast %30 : f32 to vector<16x38xf32>
    %257 = arith.mulf %256, %255 : vector<16x38xf32>
    %258 = arith.addf %239, %257 : vector<16x38xf32>
    %c1_116 = arith.constant 1 : index
    %c0_117 = arith.constant 0 : index
    %259 = vector.load %arg5[%c1_116, %c0_117] : memref<22x38xf32, #tpu.memory_space<vmem>>, vector<16x38xf32>
    %260 = vector.broadcast %37 : f32 to vector<16x38xf32>
    %261 = arith.mulf %260, %259 : vector<16x38xf32>
    %262 = arith.addf %243, %261 : vector<16x38xf32>
    %c2_118 = arith.constant 2 : index
    %c0_119 = arith.constant 0 : index
    %263 = vector.load %arg5[%c2_118, %c0_119] : memref<22x38xf32, #tpu.memory_space<vmem>>, vector<16x38xf32>
    %264 = vector.broadcast %44 : f32 to vector<16x38xf32>
    %265 = arith.mulf %264, %263 : vector<16x38xf32>
    %266 = arith.addf %247, %265 : vector<16x38xf32>
    %c3_120 = arith.constant 3 : index
    %c0_121 = arith.constant 0 : index
    %267 = vector.load %arg5[%c3_120, %c0_121] : memref<22x38xf32, #tpu.memory_space<vmem>>, vector<16x38xf32>
    %268 = vector.broadcast %51 : f32 to vector<16x38xf32>
    %269 = arith.mulf %268, %267 : vector<16x38xf32>
    %270 = arith.addf %251, %269 : vector<16x38xf32>
    %c4_122 = arith.constant 4 : index
    %c0_123 = arith.constant 0 : index
    %271 = vector.load %arg5[%c4_122, %c0_123] : memref<22x38xf32, #tpu.memory_space<vmem>>, vector<16x38xf32>
    %272 = vector.broadcast %58 : f32 to vector<16x38xf32>
    %273 = arith.mulf %272, %271 : vector<16x38xf32>
    %274 = arith.addf %258, %273 : vector<16x38xf32>
    %c5_124 = arith.constant 5 : index
    %c0_125 = arith.constant 0 : index
    %275 = vector.load %arg5[%c5_124, %c0_125] : memref<22x38xf32, #tpu.memory_space<vmem>>, vector<16x38xf32>
    %276 = vector.broadcast %65 : f32 to vector<16x38xf32>
    %277 = arith.mulf %276, %275 : vector<16x38xf32>
    %278 = arith.addf %262, %277 : vector<16x38xf32>
    %c6_126 = arith.constant 6 : index
    %c0_127 = arith.constant 0 : index
    %279 = vector.load %arg5[%c6_126, %c0_127] : memref<22x38xf32, #tpu.memory_space<vmem>>, vector<16x38xf32>
    %280 = vector.broadcast %72 : f32 to vector<16x38xf32>
    %281 = arith.mulf %280, %279 : vector<16x38xf32>
    %282 = arith.addf %266, %281 : vector<16x38xf32>
    %c0_128 = arith.constant 0 : index
    %c0_129 = arith.constant 0 : index
    %c5_130 = arith.constant 5 : index
    %283 = vector.load %arg4[%c0_128, %c0_129, %c5_130] : memref<2x22x44xf32, #tpu.memory_space<vmem>>, vector<1x22x38xf32>
    %284 = vector.shape_cast %283 : vector<1x22x38xf32> to vector<22x38xf32>
    %c0_131 = arith.constant 0 : index
    %c0_132 = arith.constant 0 : index
    %285 = vector.load %arg5[%c0_131, %c0_132] : memref<22x38xf32, #tpu.memory_space<vmem>>, vector<22x38xf32>
    tpu.vector_store %arg5[%c0_131, %c0_132], %284 {strides = array<i32>} : memref<22x38xf32, #tpu.memory_space<vmem>>, vector<22x38xf32>,
    %c0_133 = arith.constant 0 : index
    %c0_134 = arith.constant 0 : index
    %286 = vector.load %arg5[%c0_133, %c0_134] : memref<22x38xf32, #tpu.memory_space<vmem>>, vector<16x38xf32>
    %287 = vector.broadcast %31 : f32 to vector<16x38xf32>
    %288 = arith.mulf %287, %286 : vector<16x38xf32>
    %289 = arith.addf %270, %288 : vector<16x38xf32>
    %c1_135 = arith.constant 1 : index
    %c0_136 = arith.constant 0 : index
    %290 = vector.load %arg5[%c1_135, %c0_136] : memref<22x38xf32, #tpu.memory_space<vmem>>, vector<16x38xf32>
    %291 = vector.broadcast %38 : f32 to vector<16x38xf32>
    %292 = arith.mulf %291, %290 : vector<16x38xf32>
    %293 = arith.addf %274, %292 : vector<16x38xf32>
    %c2_137 = arith.constant 2 : index
    %c0_138 = arith.constant 0 : index
    %294 = vector.load %arg5[%c2_137, %c0_138] : memref<22x38xf32, #tpu.memory_space<vmem>>, vector<16x38xf32>
    %295 = vector.broadcast %45 : f32 to vector<16x38xf32>
    %296 = arith.mulf %295, %294 : vector<16x38xf32>
    %297 = arith.addf %278, %296 : vector<16x38xf32>
    %c3_139 = arith.constant 3 : index
    %c0_140 = arith.constant 0 : index
    %298 = vector.load %arg5[%c3_139, %c0_140] : memref<22x38xf32, #tpu.memory_space<vmem>>, vector<16x38xf32>
    %299 = vector.broadcast %52 : f32 to vector<16x38xf32>
    %300 = arith.mulf %299, %298 : vector<16x38xf32>
    %301 = arith.addf %282, %300 : vector<16x38xf32>
    %c4_141 = arith.constant 4 : index
    %c0_142 = arith.constant 0 : index
    %302 = vector.load %arg5[%c4_141, %c0_142] : memref<22x38xf32, #tpu.memory_space<vmem>>, vector<16x38xf32>
    %303 = vector.broadcast %59 : f32 to vector<16x38xf32>
    %304 = arith.mulf %303, %302 : vector<16x38xf32>
    %305 = arith.addf %289, %304 : vector<16x38xf32>
    %c5_143 = arith.constant 5 : index
    %c0_144 = arith.constant 0 : index
    %306 = vector.load %arg5[%c5_143, %c0_144] : memref<22x38xf32, #tpu.memory_space<vmem>>, vector<16x38xf32>
    %307 = vector.broadcast %66 : f32 to vector<16x38xf32>
    %308 = arith.mulf %307, %306 : vector<16x38xf32>
    %309 = arith.addf %293, %308 : vector<16x38xf32>
    %c6_145 = arith.constant 6 : index
    %c0_146 = arith.constant 0 : index
    %310 = vector.load %arg5[%c6_145, %c0_146] : memref<22x38xf32, #tpu.memory_space<vmem>>, vector<16x38xf32>
    %311 = vector.broadcast %73 : f32 to vector<16x38xf32>
    %312 = arith.mulf %311, %310 : vector<16x38xf32>
    %313 = arith.addf %297, %312 : vector<16x38xf32>
    %c0_147 = arith.constant 0 : index
    %c0_148 = arith.constant 0 : index
    %c6_149 = arith.constant 6 : index
    %314 = vector.load %arg4[%c0_147, %c0_148, %c6_149] : memref<2x22x44xf32, #tpu.memory_space<vmem>>, vector<1x22x38xf32>
    %315 = vector.shape_cast %314 : vector<1x22x38xf32> to vector<22x38xf32>
    %c0_150 = arith.constant 0 : index
    %c0_151 = arith.constant 0 : index
    %316 = vector.load %arg5[%c0_150, %c0_151] : memref<22x38xf32, #tpu.memory_space<vmem>>, vector<22x38xf32>
    tpu.vector_store %arg5[%c0_150, %c0_151], %315 {strides = array<i32>} : memref<22x38xf32, #tpu.memory_space<vmem>>, vector<22x38xf32>,
    %c0_152 = arith.constant 0 : index
    %c0_153 = arith.constant 0 : index
    %317 = vector.load %arg5[%c0_152, %c0_153] : memref<22x38xf32, #tpu.memory_space<vmem>>, vector<16x38xf32>
    %318 = vector.broadcast %32 : f32 to vector<16x38xf32>
    %319 = arith.mulf %318, %317 : vector<16x38xf32>
    %320 = arith.addf %301, %319 : vector<16x38xf32>
    %c1_154 = arith.constant 1 : index
    %c0_155 = arith.constant 0 : index
    %321 = vector.load %arg5[%c1_154, %c0_155] : memref<22x38xf32, #tpu.memory_space<vmem>>, vector<16x38xf32>
    %322 = vector.broadcast %39 : f32 to vector<16x38xf32>
    %323 = arith.mulf %322, %321 : vector<16x38xf32>
    %324 = arith.addf %305, %323 : vector<16x38xf32>
    %c2_156 = arith.constant 2 : index
    %c0_157 = arith.constant 0 : index
    %325 = vector.load %arg5[%c2_156, %c0_157] : memref<22x38xf32, #tpu.memory_space<vmem>>, vector<16x38xf32>
    %326 = vector.broadcast %46 : f32 to vector<16x38xf32>
    %327 = arith.mulf %326, %325 : vector<16x38xf32>
    %328 = arith.addf %309, %327 : vector<16x38xf32>
    %c3_158 = arith.constant 3 : index
    %c0_159 = arith.constant 0 : index
    %329 = vector.load %arg5[%c3_158, %c0_159] : memref<22x38xf32, #tpu.memory_space<vmem>>, vector<16x38xf32>
    %330 = vector.broadcast %53 : f32 to vector<16x38xf32>
    %331 = arith.mulf %330, %329 : vector<16x38xf32>
    %332 = arith.addf %313, %331 : vector<16x38xf32>
    %c4_160 = arith.constant 4 : index
    %c0_161 = arith.constant 0 : index
    %333 = vector.load %arg5[%c4_160, %c0_161] : memref<22x38xf32, #tpu.memory_space<vmem>>, vector<16x38xf32>
    %334 = vector.broadcast %60 : f32 to vector<16x38xf32>
    %335 = arith.mulf %334, %333 : vector<16x38xf32>
    %336 = arith.addf %320, %335 : vector<16x38xf32>
    %c5_162 = arith.constant 5 : index
    %c0_163 = arith.constant 0 : index
    %337 = vector.load %arg5[%c5_162, %c0_163] : memref<22x38xf32, #tpu.memory_space<vmem>>, vector<16x38xf32>
    %338 = vector.broadcast %67 : f32 to vector<16x38xf32>
    %339 = arith.mulf %338, %337 : vector<16x38xf32>
    %340 = arith.addf %324, %339 : vector<16x38xf32>
    %c6_164 = arith.constant 6 : index
    %c0_165 = arith.constant 0 : index
    %341 = vector.load %arg5[%c6_164, %c0_165] : memref<22x38xf32, #tpu.memory_space<vmem>>, vector<16x38xf32>
    %342 = vector.broadcast %74 : f32 to vector<16x38xf32>
    %343 = arith.mulf %342, %341 : vector<16x38xf32>
    %344 = arith.addf %328, %343 : vector<16x38xf32>
    %c1_166 = arith.constant 1 : index
    %c0_167 = arith.constant 0 : index
    %c0_168 = arith.constant 0 : index
    %345 = vector.load %arg4[%c1_166, %c0_167, %c0_168] : memref<2x22x44xf32, #tpu.memory_space<vmem>>, vector<1x22x38xf32>
    %346 = vector.shape_cast %345 : vector<1x22x38xf32> to vector<22x38xf32>
    %c0_169 = arith.constant 0 : index
    %c0_170 = arith.constant 0 : index
    %347 = vector.load %arg5[%c0_169, %c0_170] : memref<22x38xf32, #tpu.memory_space<vmem>>, vector<22x38xf32>
    tpu.vector_store %arg5[%c0_169, %c0_170], %346 {strides = array<i32>} : memref<22x38xf32, #tpu.memory_space<vmem>>, vector<22x38xf32>,
    %c0_171 = arith.constant 0 : index
    %c0_172 = arith.constant 0 : index
    %348 = vector.load %arg5[%c0_171, %c0_172] : memref<22x38xf32, #tpu.memory_space<vmem>>, vector<16x38xf32>
    %349 = vector.broadcast %75 : f32 to vector<16x38xf32>
    %350 = arith.mulf %349, %348 : vector<16x38xf32>
    %351 = arith.addf %332, %350 : vector<16x38xf32>
    %c1_173 = arith.constant 1 : index
    %c0_174 = arith.constant 0 : index
    %352 = vector.load %arg5[%c1_173, %c0_174] : memref<22x38xf32, #tpu.memory_space<vmem>>, vector<16x38xf32>
    %353 = vector.broadcast %82 : f32 to vector<16x38xf32>
    %354 = arith.mulf %353, %352 : vector<16x38xf32>
    %355 = arith.addf %336, %354 : vector<16x38xf32>
    %c2_175 = arith.constant 2 : index
    %c0_176 = arith.constant 0 : index
    %356 = vector.load %arg5[%c2_175, %c0_176] : memref<22x38xf32, #tpu.memory_space<vmem>>, vector<16x38xf32>
    %357 = vector.broadcast %89 : f32 to vector<16x38xf32>
    %358 = arith.mulf %357, %356 : vector<16x38xf32>
    %359 = arith.addf %340, %358 : vector<16x38xf32>
    %c3_177 = arith.constant 3 : index
    %c0_178 = arith.constant 0 : index
    %360 = vector.load %arg5[%c3_177, %c0_178] : memref<22x38xf32, #tpu.memory_space<vmem>>, vector<16x38xf32>
    %361 = vector.broadcast %96 : f32 to vector<16x38xf32>
    %362 = arith.mulf %361, %360 : vector<16x38xf32>
    %363 = arith.addf %344, %362 : vector<16x38xf32>
    %c4_179 = arith.constant 4 : index
    %c0_180 = arith.constant 0 : index
    %364 = vector.load %arg5[%c4_179, %c0_180] : memref<22x38xf32, #tpu.memory_space<vmem>>, vector<16x38xf32>
    %365 = vector.broadcast %103 : f32 to vector<16x38xf32>
    %366 = arith.mulf %365, %364 : vector<16x38xf32>
    %367 = arith.addf %351, %366 : vector<16x38xf32>
    %c5_181 = arith.constant 5 : index
    %c0_182 = arith.constant 0 : index
    %368 = vector.load %arg5[%c5_181, %c0_182] : memref<22x38xf32, #tpu.memory_space<vmem>>, vector<16x38xf32>
    %369 = vector.broadcast %110 : f32 to vector<16x38xf32>
    %370 = arith.mulf %369, %368 : vector<16x38xf32>
    %371 = arith.addf %355, %370 : vector<16x38xf32>
    %c6_183 = arith.constant 6 : index
    %c0_184 = arith.constant 0 : index
    %372 = vector.load %arg5[%c6_183, %c0_184] : memref<22x38xf32, #tpu.memory_space<vmem>>, vector<16x38xf32>
    %373 = vector.broadcast %117 : f32 to vector<16x38xf32>
    %374 = arith.mulf %373, %372 : vector<16x38xf32>
    %375 = arith.addf %359, %374 : vector<16x38xf32>
    %c1_185 = arith.constant 1 : index
    %c0_186 = arith.constant 0 : index
    %c1_187 = arith.constant 1 : index
    %376 = vector.load %arg4[%c1_185, %c0_186, %c1_187] : memref<2x22x44xf32, #tpu.memory_space<vmem>>, vector<1x22x38xf32>
    %377 = vector.shape_cast %376 : vector<1x22x38xf32> to vector<22x38xf32>
    %c0_188 = arith.constant 0 : index
    %c0_189 = arith.constant 0 : index
    %378 = vector.load %arg5[%c0_188, %c0_189] : memref<22x38xf32, #tpu.memory_space<vmem>>, vector<22x38xf32>
    tpu.vector_store %arg5[%c0_188, %c0_189], %377 {strides = array<i32>} : memref<22x38xf32, #tpu.memory_space<vmem>>, vector<22x38xf32>,
    %c0_190 = arith.constant 0 : index
    %c0_191 = arith.constant 0 : index
    %379 = vector.load %arg5[%c0_190, %c0_191] : memref<22x38xf32, #tpu.memory_space<vmem>>, vector<16x38xf32>
    %380 = vector.broadcast %76 : f32 to vector<16x38xf32>
    %381 = arith.mulf %380, %379 : vector<16x38xf32>
    %382 = arith.addf %363, %381 : vector<16x38xf32>
    %c1_192 = arith.constant 1 : index
    %c0_193 = arith.constant 0 : index
    %383 = vector.load %arg5[%c1_192, %c0_193] : memref<22x38xf32, #tpu.memory_space<vmem>>, vector<16x38xf32>
    %384 = vector.broadcast %83 : f32 to vector<16x38xf32>
    %385 = arith.mulf %384, %383 : vector<16x38xf32>
    %386 = arith.addf %367, %385 : vector<16x38xf32>
    %c2_194 = arith.constant 2 : index
    %c0_195 = arith.constant 0 : index
    %387 = vector.load %arg5[%c2_194, %c0_195] : memref<22x38xf32, #tpu.memory_space<vmem>>, vector<16x38xf32>
    %388 = vector.broadcast %90 : f32 to vector<16x38xf32>
    %389 = arith.mulf %388, %387 : vector<16x38xf32>
    %390 = arith.addf %371, %389 : vector<16x38xf32>
    %c3_196 = arith.constant 3 : index
    %c0_197 = arith.constant 0 : index
    %391 = vector.load %arg5[%c3_196, %c0_197] : memref<22x38xf32, #tpu.memory_space<vmem>>, vector<16x38xf32>
    %392 = vector.broadcast %97 : f32 to vector<16x38xf32>
    %393 = arith.mulf %392, %391 : vector<16x38xf32>
    %394 = arith.addf %375, %393 : vector<16x38xf32>
    %c4_198 = arith.constant 4 : index
    %c0_199 = arith.constant 0 : index
    %395 = vector.load %arg5[%c4_198, %c0_199] : memref<22x38xf32, #tpu.memory_space<vmem>>, vector<16x38xf32>
    %396 = vector.broadcast %104 : f32 to vector<16x38xf32>
    %397 = arith.mulf %396, %395 : vector<16x38xf32>
    %398 = arith.addf %382, %397 : vector<16x38xf32>
    %c5_200 = arith.constant 5 : index
    %c0_201 = arith.constant 0 : index
    %399 = vector.load %arg5[%c5_200, %c0_201] : memref<22x38xf32, #tpu.memory_space<vmem>>, vector<16x38xf32>
    %400 = vector.broadcast %111 : f32 to vector<16x38xf32>
    %401 = arith.mulf %400, %399 : vector<16x38xf32>
    %402 = arith.addf %386, %401 : vector<16x38xf32>
    %c6_202 = arith.constant 6 : index
    %c0_203 = arith.constant 0 : index
    %403 = vector.load %arg5[%c6_202, %c0_203] : memref<22x38xf32, #tpu.memory_space<vmem>>, vector<16x38xf32>
    %404 = vector.broadcast %118 : f32 to vector<16x38xf32>
    %405 = arith.mulf %404, %403 : vector<16x38xf32>
    %406 = arith.addf %390, %405 : vector<16x38xf32>
    %c1_204 = arith.constant 1 : index
    %c0_205 = arith.constant 0 : index
    %c2_206 = arith.constant 2 : index
    %407 = vector.load %arg4[%c1_204, %c0_205, %c2_206] : memref<2x22x44xf32, #tpu.memory_space<vmem>>, vector<1x22x38xf32>
    %408 = vector.shape_cast %407 : vector<1x22x38xf32> to vector<22x38xf32>
    %c0_207 = arith.constant 0 : index
    %c0_208 = arith.constant 0 : index
    %409 = vector.load %arg5[%c0_207, %c0_208] : memref<22x38xf32, #tpu.memory_space<vmem>>, vector<22x38xf32>
    tpu.vector_store %arg5[%c0_207, %c0_208], %408 {strides = array<i32>} : memref<22x38xf32, #tpu.memory_space<vmem>>, vector<22x38xf32>,
    %c0_209 = arith.constant 0 : index
    %c0_210 = arith.constant 0 : index
    %410 = vector.load %arg5[%c0_209, %c0_210] : memref<22x38xf32, #tpu.memory_space<vmem>>, vector<16x38xf32>
    %411 = vector.broadcast %77 : f32 to vector<16x38xf32>
    %412 = arith.mulf %411, %410 : vector<16x38xf32>
    %413 = arith.addf %394, %412 : vector<16x38xf32>
    %c1_211 = arith.constant 1 : index
    %c0_212 = arith.constant 0 : index
    %414 = vector.load %arg5[%c1_211, %c0_212] : memref<22x38xf32, #tpu.memory_space<vmem>>, vector<16x38xf32>
    %415 = vector.broadcast %84 : f32 to vector<16x38xf32>
    %416 = arith.mulf %415, %414 : vector<16x38xf32>
    %417 = arith.addf %398, %416 : vector<16x38xf32>
    %c2_213 = arith.constant 2 : index
    %c0_214 = arith.constant 0 : index
    %418 = vector.load %arg5[%c2_213, %c0_214] : memref<22x38xf32, #tpu.memory_space<vmem>>, vector<16x38xf32>
    %419 = vector.broadcast %91 : f32 to vector<16x38xf32>
    %420 = arith.mulf %419, %418 : vector<16x38xf32>
    %421 = arith.addf %402, %420 : vector<16x38xf32>
    %c3_215 = arith.constant 3 : index
    %c0_216 = arith.constant 0 : index
    %422 = vector.load %arg5[%c3_215, %c0_216] : memref<22x38xf32, #tpu.memory_space<vmem>>, vector<16x38xf32>
    %423 = vector.broadcast %98 : f32 to vector<16x38xf32>
    %424 = arith.mulf %423, %422 : vector<16x38xf32>
    %425 = arith.addf %406, %424 : vector<16x38xf32>
    %c4_217 = arith.constant 4 : index
    %c0_218 = arith.constant 0 : index
    %426 = vector.load %arg5[%c4_217, %c0_218] : memref<22x38xf32, #tpu.memory_space<vmem>>, vector<16x38xf32>
    %427 = vector.broadcast %105 : f32 to vector<16x38xf32>
    %428 = arith.mulf %427, %426 : vector<16x38xf32>
    %429 = arith.addf %413, %428 : vector<16x38xf32>
    %c5_219 = arith.constant 5 : index
    %c0_220 = arith.constant 0 : index
    %430 = vector.load %arg5[%c5_219, %c0_220] : memref<22x38xf32, #tpu.memory_space<vmem>>, vector<16x38xf32>
    %431 = vector.broadcast %112 : f32 to vector<16x38xf32>
    %432 = arith.mulf %431, %430 : vector<16x38xf32>
    %433 = arith.addf %417, %432 : vector<16x38xf32>
    %c6_221 = arith.constant 6 : index
    %c0_222 = arith.constant 0 : index
    %434 = vector.load %arg5[%c6_221, %c0_222] : memref<22x38xf32, #tpu.memory_space<vmem>>, vector<16x38xf32>
    %435 = vector.broadcast %119 : f32 to vector<16x38xf32>
    %436 = arith.mulf %435, %434 : vector<16x38xf32>
    %437 = arith.addf %421, %436 : vector<16x38xf32>
    %c1_223 = arith.constant 1 : index
    %c0_224 = arith.constant 0 : index
    %c3_225 = arith.constant 3 : index
    %438 = vector.load %arg4[%c1_223, %c0_224, %c3_225] : memref<2x22x44xf32, #tpu.memory_space<vmem>>, vector<1x22x38xf32>
    %439 = vector.shape_cast %438 : vector<1x22x38xf32> to vector<22x38xf32>
    %c0_226 = arith.constant 0 : index
    %c0_227 = arith.constant 0 : index
    %440 = vector.load %arg5[%c0_226, %c0_227] : memref<22x38xf32, #tpu.memory_space<vmem>>, vector<22x38xf32>
    tpu.vector_store %arg5[%c0_226, %c0_227], %439 {strides = array<i32>} : memref<22x38xf32, #tpu.memory_space<vmem>>, vector<22x38xf32>,
    %c0_228 = arith.constant 0 : index
    %c0_229 = arith.constant 0 : index
    %441 = vector.load %arg5[%c0_228, %c0_229] : memref<22x38xf32, #tpu.memory_space<vmem>>, vector<16x38xf32>
    %442 = vector.broadcast %78 : f32 to vector<16x38xf32>
    %443 = arith.mulf %442, %441 : vector<16x38xf32>
    %444 = arith.addf %425, %443 : vector<16x38xf32>
    %c1_230 = arith.constant 1 : index
    %c0_231 = arith.constant 0 : index
    %445 = vector.load %arg5[%c1_230, %c0_231] : memref<22x38xf32, #tpu.memory_space<vmem>>, vector<16x38xf32>
    %446 = vector.broadcast %85 : f32 to vector<16x38xf32>
    %447 = arith.mulf %446, %445 : vector<16x38xf32>
    %448 = arith.addf %429, %447 : vector<16x38xf32>
    %c2_232 = arith.constant 2 : index
    %c0_233 = arith.constant 0 : index
    %449 = vector.load %arg5[%c2_232, %c0_233] : memref<22x38xf32, #tpu.memory_space<vmem>>, vector<16x38xf32>
    %450 = vector.broadcast %92 : f32 to vector<16x38xf32>
    %451 = arith.mulf %450, %449 : vector<16x38xf32>
    %452 = arith.addf %433, %451 : vector<16x38xf32>
    %c3_234 = arith.constant 3 : index
    %c0_235 = arith.constant 0 : index
    %453 = vector.load %arg5[%c3_234, %c0_235] : memref<22x38xf32, #tpu.memory_space<vmem>>, vector<16x38xf32>
    %454 = vector.broadcast %99 : f32 to vector<16x38xf32>
    %455 = arith.mulf %454, %453 : vector<16x38xf32>
    %456 = arith.addf %437, %455 : vector<16x38xf32>
    %c4_236 = arith.constant 4 : index
    %c0_237 = arith.constant 0 : index
    %457 = vector.load %arg5[%c4_236, %c0_237] : memref<22x38xf32, #tpu.memory_space<vmem>>, vector<16x38xf32>
    %458 = vector.broadcast %106 : f32 to vector<16x38xf32>
    %459 = arith.mulf %458, %457 : vector<16x38xf32>
    %460 = arith.addf %444, %459 : vector<16x38xf32>
    %c5_238 = arith.constant 5 : index
    %c0_239 = arith.constant 0 : index
    %461 = vector.load %arg5[%c5_238, %c0_239] : memref<22x38xf32, #tpu.memory_space<vmem>>, vector<16x38xf32>
    %462 = vector.broadcast %113 : f32 to vector<16x38xf32>
    %463 = arith.mulf %462, %461 : vector<16x38xf32>
    %464 = arith.addf %448, %463 : vector<16x38xf32>
    %c6_240 = arith.constant 6 : index
    %c0_241 = arith.constant 0 : index
    %465 = vector.load %arg5[%c6_240, %c0_241] : memref<22x38xf32, #tpu.memory_space<vmem>>, vector<16x38xf32>
    %466 = vector.broadcast %120 : f32 to vector<16x38xf32>
    %467 = arith.mulf %466, %465 : vector<16x38xf32>
    %468 = arith.addf %452, %467 : vector<16x38xf32>
    %c1_242 = arith.constant 1 : index
    %c0_243 = arith.constant 0 : index
    %c4_244 = arith.constant 4 : index
    %469 = vector.load %arg4[%c1_242, %c0_243, %c4_244] : memref<2x22x44xf32, #tpu.memory_space<vmem>>, vector<1x22x38xf32>
    %470 = vector.shape_cast %469 : vector<1x22x38xf32> to vector<22x38xf32>
    %c0_245 = arith.constant 0 : index
    %c0_246 = arith.constant 0 : index
    %471 = vector.load %arg5[%c0_245, %c0_246] : memref<22x38xf32, #tpu.memory_space<vmem>>, vector<22x38xf32>
    tpu.vector_store %arg5[%c0_245, %c0_246], %470 {strides = array<i32>} : memref<22x38xf32, #tpu.memory_space<vmem>>, vector<22x38xf32>,
    %c0_247 = arith.constant 0 : index
    %c0_248 = arith.constant 0 : index
    %472 = vector.load %arg5[%c0_247, %c0_248] : memref<22x38xf32, #tpu.memory_space<vmem>>, vector<16x38xf32>
    %473 = vector.broadcast %79 : f32 to vector<16x38xf32>
    %474 = arith.mulf %473, %472 : vector<16x38xf32>
    %475 = arith.addf %456, %474 : vector<16x38xf32>
    %c1_249 = arith.constant 1 : index
    %c0_250 = arith.constant 0 : index
    %476 = vector.load %arg5[%c1_249, %c0_250] : memref<22x38xf32, #tpu.memory_space<vmem>>, vector<16x38xf32>
    %477 = vector.broadcast %86 : f32 to vector<16x38xf32>
    %478 = arith.mulf %477, %476 : vector<16x38xf32>
    %479 = arith.addf %460, %478 : vector<16x38xf32>
    %c2_251 = arith.constant 2 : index
    %c0_252 = arith.constant 0 : index
    %480 = vector.load %arg5[%c2_251, %c0_252] : memref<22x38xf32, #tpu.memory_space<vmem>>, vector<16x38xf32>
    %481 = vector.broadcast %93 : f32 to vector<16x38xf32>
    %482 = arith.mulf %481, %480 : vector<16x38xf32>
    %483 = arith.addf %464, %482 : vector<16x38xf32>
    %c3_253 = arith.constant 3 : index
    %c0_254 = arith.constant 0 : index
    %484 = vector.load %arg5[%c3_253, %c0_254] : memref<22x38xf32, #tpu.memory_space<vmem>>, vector<16x38xf32>
    %485 = vector.broadcast %100 : f32 to vector<16x38xf32>
    %486 = arith.mulf %485, %484 : vector<16x38xf32>
    %487 = arith.addf %468, %486 : vector<16x38xf32>
    %c4_255 = arith.constant 4 : index
    %c0_256 = arith.constant 0 : index
    %488 = vector.load %arg5[%c4_255, %c0_256] : memref<22x38xf32, #tpu.memory_space<vmem>>, vector<16x38xf32>
    %489 = vector.broadcast %107 : f32 to vector<16x38xf32>
    %490 = arith.mulf %489, %488 : vector<16x38xf32>
    %491 = arith.addf %475, %490 : vector<16x38xf32>
    %c5_257 = arith.constant 5 : index
    %c0_258 = arith.constant 0 : index
    %492 = vector.load %arg5[%c5_257, %c0_258] : memref<22x38xf32, #tpu.memory_space<vmem>>, vector<16x38xf32>
    %493 = vector.broadcast %114 : f32 to vector<16x38xf32>
    %494 = arith.mulf %493, %492 : vector<16x38xf32>
    %495 = arith.addf %479, %494 : vector<16x38xf32>
    %c6_259 = arith.constant 6 : index
    %c0_260 = arith.constant 0 : index
    %496 = vector.load %arg5[%c6_259, %c0_260] : memref<22x38xf32, #tpu.memory_space<vmem>>, vector<16x38xf32>
    %497 = vector.broadcast %121 : f32 to vector<16x38xf32>
    %498 = arith.mulf %497, %496 : vector<16x38xf32>
    %499 = arith.addf %483, %498 : vector<16x38xf32>
    %c1_261 = arith.constant 1 : index
    %c0_262 = arith.constant 0 : index
    %c5_263 = arith.constant 5 : index
    %500 = vector.load %arg4[%c1_261, %c0_262, %c5_263] : memref<2x22x44xf32, #tpu.memory_space<vmem>>, vector<1x22x38xf32>
    %501 = vector.shape_cast %500 : vector<1x22x38xf32> to vector<22x38xf32>
    %c0_264 = arith.constant 0 : index
    %c0_265 = arith.constant 0 : index
    %502 = vector.load %arg5[%c0_264, %c0_265] : memref<22x38xf32, #tpu.memory_space<vmem>>, vector<22x38xf32>
    tpu.vector_store %arg5[%c0_264, %c0_265], %501 {strides = array<i32>} : memref<22x38xf32, #tpu.memory_space<vmem>>, vector<22x38xf32>,
    %c0_266 = arith.constant 0 : index
    %c0_267 = arith.constant 0 : index
    %503 = vector.load %arg5[%c0_266, %c0_267] : memref<22x38xf32, #tpu.memory_space<vmem>>, vector<16x38xf32>
    %504 = vector.broadcast %80 : f32 to vector<16x38xf32>
    %505 = arith.mulf %504, %503 : vector<16x38xf32>
    %506 = arith.addf %487, %505 : vector<16x38xf32>
    %c1_268 = arith.constant 1 : index
    %c0_269 = arith.constant 0 : index
    %507 = vector.load %arg5[%c1_268, %c0_269] : memref<22x38xf32, #tpu.memory_space<vmem>>, vector<16x38xf32>
    %508 = vector.broadcast %87 : f32 to vector<16x38xf32>
    %509 = arith.mulf %508, %507 : vector<16x38xf32>
    %510 = arith.addf %491, %509 : vector<16x38xf32>
    %c2_270 = arith.constant 2 : index
    %c0_271 = arith.constant 0 : index
    %511 = vector.load %arg5[%c2_270, %c0_271] : memref<22x38xf32, #tpu.memory_space<vmem>>, vector<16x38xf32>
    %512 = vector.broadcast %94 : f32 to vector<16x38xf32>
    %513 = arith.mulf %512, %511 : vector<16x38xf32>
    %514 = arith.addf %495, %513 : vector<16x38xf32>
    %c3_272 = arith.constant 3 : index
    %c0_273 = arith.constant 0 : index
    %515 = vector.load %arg5[%c3_272, %c0_273] : memref<22x38xf32, #tpu.memory_space<vmem>>, vector<16x38xf32>
    %516 = vector.broadcast %101 : f32 to vector<16x38xf32>
    %517 = arith.mulf %516, %515 : vector<16x38xf32>
    %518 = arith.addf %499, %517 : vector<16x38xf32>
    %c4_274 = arith.constant 4 : index
    %c0_275 = arith.constant 0 : index
    %519 = vector.load %arg5[%c4_274, %c0_275] : memref<22x38xf32, #tpu.memory_space<vmem>>, vector<16x38xf32>
    %520 = vector.broadcast %108 : f32 to vector<16x38xf32>
    %521 = arith.mulf %520, %519 : vector<16x38xf32>
    %522 = arith.addf %506, %521 : vector<16x38xf32>
    %c5_276 = arith.constant 5 : index
    %c0_277 = arith.constant 0 : index
    %523 = vector.load %arg5[%c5_276, %c0_277] : memref<22x38xf32, #tpu.memory_space<vmem>>, vector<16x38xf32>
    %524 = vector.broadcast %115 : f32 to vector<16x38xf32>
    %525 = arith.mulf %524, %523 : vector<16x38xf32>
    %526 = arith.addf %510, %525 : vector<16x38xf32>
    %c6_278 = arith.constant 6 : index
    %c0_279 = arith.constant 0 : index
    %527 = vector.load %arg5[%c6_278, %c0_279] : memref<22x38xf32, #tpu.memory_space<vmem>>, vector<16x38xf32>
    %528 = vector.broadcast %122 : f32 to vector<16x38xf32>
    %529 = arith.mulf %528, %527 : vector<16x38xf32>
    %530 = arith.addf %514, %529 : vector<16x38xf32>
    %c1_280 = arith.constant 1 : index
    %c0_281 = arith.constant 0 : index
    %c6_282 = arith.constant 6 : index
    %531 = vector.load %arg4[%c1_280, %c0_281, %c6_282] : memref<2x22x44xf32, #tpu.memory_space<vmem>>, vector<1x22x38xf32>
    %532 = vector.shape_cast %531 : vector<1x22x38xf32> to vector<22x38xf32>
    %c0_283 = arith.constant 0 : index
    %c0_284 = arith.constant 0 : index
    %533 = vector.load %arg5[%c0_283, %c0_284] : memref<22x38xf32, #tpu.memory_space<vmem>>, vector<22x38xf32>
    tpu.vector_store %arg5[%c0_283, %c0_284], %532 {strides = array<i32>} : memref<22x38xf32, #tpu.memory_space<vmem>>, vector<22x38xf32>,
    %c0_285 = arith.constant 0 : index
    %c0_286 = arith.constant 0 : index
    %534 = vector.load %arg5[%c0_285, %c0_286] : memref<22x38xf32, #tpu.memory_space<vmem>>, vector<16x38xf32>
    %535 = vector.broadcast %81 : f32 to vector<16x38xf32>
    %536 = arith.mulf %535, %534 : vector<16x38xf32>
    %537 = arith.addf %518, %536 : vector<16x38xf32>
    %c1_287 = arith.constant 1 : index
    %c0_288 = arith.constant 0 : index
    %538 = vector.load %arg5[%c1_287, %c0_288] : memref<22x38xf32, #tpu.memory_space<vmem>>, vector<16x38xf32>
    %539 = vector.broadcast %88 : f32 to vector<16x38xf32>
    %540 = arith.mulf %539, %538 : vector<16x38xf32>
    %541 = arith.addf %522, %540 : vector<16x38xf32>
    %c2_289 = arith.constant 2 : index
    %c0_290 = arith.constant 0 : index
    %542 = vector.load %arg5[%c2_289, %c0_290] : memref<22x38xf32, #tpu.memory_space<vmem>>, vector<16x38xf32>
    %543 = vector.broadcast %95 : f32 to vector<16x38xf32>
    %544 = arith.mulf %543, %542 : vector<16x38xf32>
    %545 = arith.addf %526, %544 : vector<16x38xf32>
    %c3_291 = arith.constant 3 : index
    %c0_292 = arith.constant 0 : index
    %546 = vector.load %arg5[%c3_291, %c0_292] : memref<22x38xf32, #tpu.memory_space<vmem>>, vector<16x38xf32>
    %547 = vector.broadcast %102 : f32 to vector<16x38xf32>
    %548 = arith.mulf %547, %546 : vector<16x38xf32>
    %549 = arith.addf %530, %548 : vector<16x38xf32>
    %c4_293 = arith.constant 4 : index
    %c0_294 = arith.constant 0 : index
    %550 = vector.load %arg5[%c4_293, %c0_294] : memref<22x38xf32, #tpu.memory_space<vmem>>, vector<16x38xf32>
    %551 = vector.broadcast %109 : f32 to vector<16x38xf32>
    %552 = arith.mulf %551, %550 : vector<16x38xf32>
    %553 = arith.addf %537, %552 : vector<16x38xf32>
    %c5_295 = arith.constant 5 : index
    %c0_296 = arith.constant 0 : index
    %554 = vector.load %arg5[%c5_295, %c0_296] : memref<22x38xf32, #tpu.memory_space<vmem>>, vector<16x38xf32>
    %555 = vector.broadcast %116 : f32 to vector<16x38xf32>
    %556 = arith.mulf %555, %554 : vector<16x38xf32>
    %557 = arith.addf %541, %556 : vector<16x38xf32>
    %c6_297 = arith.constant 6 : index
    %c0_298 = arith.constant 0 : index
    %558 = vector.load %arg5[%c6_297, %c0_298] : memref<22x38xf32, #tpu.memory_space<vmem>>, vector<16x38xf32>
    %559 = vector.broadcast %123 : f32 to vector<16x38xf32>
    %560 = arith.mulf %559, %558 : vector<16x38xf32>
    %561 = arith.addf %545, %560 : vector<16x38xf32>
    %562 = arith.addf %557, %561 : vector<16x38xf32>
    %563 = arith.addf %562, %549 : vector<16x38xf32>
    %564 = arith.addf %563, %553 : vector<16x38xf32>
    %cst_299 = arith.constant 0.000000e+00 : f32
    %565 = vector.broadcast %cst_299 : f32 to vector<16x38xf32>
    %566 = arith.subf %565, %564 : vector<16x38xf32>
    %567 = math.exp %566 : vector<16x38xf32>
    %cst_300 = arith.constant 1.000000e+00 : f32
    %568 = vector.broadcast %cst_300 : f32 to vector<16x38xf32>
    %569 = arith.addf %568, %567 : vector<16x38xf32>
    %570 = tpu.reciprocal %569 : vector<16x38xf32> -> vector<16x38xf32>
    %c0_301 = arith.constant 0 : index
    %c0_302 = arith.constant 0 : index
    %c0_303 = arith.constant 0 : index
    %571 = vector.load %arg3[%c0_301, %c0_302, %c0_303] : memref<1x16x38xf32, #tpu.memory_space<vmem>>, vector<1x16x38xf32>
    %572 = vector.shape_cast %571 : vector<1x16x38xf32> to vector<16x38xf32>
    %573 = vector.shape_cast %570 : vector<16x38xf32> to vector<1x16x38xf32>
    tpu.vector_store %arg3[%c0_301, %c0_302, %c0_303], %573 {strides = array<i32>} : memref<1x16x38xf32, #tpu.memory_space<vmem>>, vector<1x16x38xf32>,
    return
  }
  func.func @transform_0(%arg0: i32) -> i32 {
    %c0_i32 = arith.constant 0 : i32
    %c0_i32_0 = arith.constant 0 : i32
    return %c0_i32 : i32
  }
  func.func @transform_1(%arg0: i32) -> (i32, i32, i32, i32) {
    %c0_i32 = arith.constant 0 : i32
    %c0_i32_0 = arith.constant 0 : i32
    %c0_i32_1 = arith.constant 0 : i32
    %c0_i32_2 = arith.constant 0 : i32
    return %arg0, %c0_i32, %c0_i32_0, %c0_i32_1 : i32, i32, i32, i32
  }
  func.func @transform_2(%arg0: i32) -> (i32, i32, i32) {
    %c0_i32 = arith.constant 0 : i32
    %c0_i32_0 = arith.constant 0 : i32
    %c0_i32_1 = arith.constant 0 : i32
    return %arg0, %c0_i32, %c0_i32_0 : i32, i32, i32
  }
}

</mosaic_0001>

<llo_original>
// kernel: tpu_custom_call.1
$region0: #{tpu_custom_call.1}
  #allocation0 [shape = 'u32[]', space=smem, size = 0x4, offset = 0x4, fixed_abs, tag = 'smem constant byte address 0x4 - core index']
  #allocation1 [shape = 'u32[144,128]{1,0:T(1,128)}', space=vmem, size = 0x12000, scoped, tag = 'internal scratch']
  #allocation2 [shape = 'f32[2,22,44]{2,1,0:T(8,128)}', space=vmem, size = 0x6000, scoped, tag = 'scratch operand']
  #allocation3 [shape = 'f32[22,38]{1,0:T(8,128)}', space=vmem, size = 0x3000, scoped, tag = 'scratch operand']
  %s0 = inlined_call_operand.hbm [shape: f32[98], index: 0, kind: input, shape index: {}]
  %s1 = inlined_call_operand.hbm [shape: f32[2,4,16,16], index: 1, kind: input, shape index: {}]
  %s2 = inlined_call_operand.hbm [shape: f32[1,16,38], index: 2, kind: output, shape index: {}]
  %s3 = sld [smem:[#allocation0]]
  $region26: #{tpu_custom_call.1} parent=0
    _
  %s5 = ssub.s32 1, %s3
  %s6 = scalar_select 0, %s5, %s3
  $region1: #{tpu_custom_call.1} parent=0
    #allocation4 [shape = 'u8[512]{0}', space=smem, size = 0x200, scoped, tag = 'input window, operand 0, single buffered']
    #allocation5 [shape = 's32[1]{0}', space=sflag, size = 0x4, scoped, tag = 'scoped memory for tpu_custom_call.1']
    #allocation6 [shape = 's32[1]{0}', space=sflag, size = 0x4, scoped, tag = 'scoped memory for tpu_custom_call.1']
    #allocation7 [shape = 's32[1]{0}', space=sflag, size = 0x4, scoped, tag = 'scoped memory for tpu_custom_call.1']
    #allocation8 [shape = 'u8[65536]{0}', space=vmem, size = 0x10000, scoped, tag = 'input window, operand 1, single buffered']
    #allocation9 [shape = 'u8[8192]{0}', space=vmem, size = 0x2000, scoped, tag = 'output window, operand 0, single buffered']
    %7 = vsyncpa [#allocation7], 0
    %8 = vsyncpa [#allocation5], 0
    %9 = vsyncpa [#allocation6], 0
    // Predicated region
    $region2: #{tpu_custom_call.1} parent=1 // pred_check
      _
    $region3: #{tpu_custom_call.1} parent=1 // pred_check_branch
      %11 = sbr.rel (0) target = $region5
    $region4: #{tpu_custom_call.1} parent=1 // pred_region
      %s13 = ssub.s32 16, 16
      %14 = vsyncadd [#allocation7], %s13
      %17 = dma.hbm_to_smem %s0, 16, [#allocation4], [#allocation7]
    $region5: #{tpu_custom_call.1} parent=1 // pred_fallthru
      _
    // Predicated region
    $region6: #{tpu_custom_call.1} parent=1 // pred_check
      _
    $region7: #{tpu_custom_call.1} parent=1 // pred_check_branch
      %19 = sbr.rel (0) target = $region9
    $region8: #{tpu_custom_call.1} parent=1 // pred_region
      %s21 = ssub.s32 2048, 2048
      %22 = vsyncadd [#allocation5], %s21
      %s23 = sshll.u32 [#allocation8], 4
      %s24 = int_to_ptr.vmem [resolvable:$true] %s23
      %29 = dma.hbm_to_vmem [thread:$0]  %s1, 2048, %s24, [#allocation5], 128, 128, 8
    $region9: #{tpu_custom_call.1} parent=1 // pred_fallthru
      _
    // Predicated region
    $region10: #{tpu_custom_call.1} parent=1 // pred_check
      _
    $region11: #{tpu_custom_call.1} parent=1 // pred_check_branch
      %31 = sbr.rel (0) target = $region13
    $region12: #{tpu_custom_call.1} parent=1 // pred_region
      %32 = dma.done [#allocation7], 16
    $region13: #{tpu_custom_call.1} parent=1 // pred_fallthru
      _
    // Predicated region
    $region14: #{tpu_custom_call.1} parent=1 // pred_check
      _
    $region15: #{tpu_custom_call.1} parent=1 // pred_check_branch
      %34 = sbr.rel (0) target = $region17
    $region16: #{tpu_custom_call.1} parent=1 // pred_region
      %35 = dma.done [#allocation5], 2048
    $region17: #{tpu_custom_call.1} parent=1 // pred_fallthru
      _
    %36 = sfence
    %vm37 = vcmask 359424
    %38 = vst.msk [vmem:[#allocation2] sm:$0xff] %vm37, 0.0
    %39 = vst.msk [vmem:[#allocation2 + $0x8] sm:$0xff] %vm37, 0.0
    %vm40 = vcmask 357376
    %41 = vst.msk [vmem:[#allocation2 + $0x10] sm:$0x3f] %vm40, 0.0
    %42 = vst.msk [vmem:[#allocation2 + $0x18] sm:$0xff] %vm37, 0.0
    %43 = vst.msk [vmem:[#allocation2 + $0x20] sm:$0xff] %vm37, 0.0
    %44 = vst.msk [vmem:[#allocation2 + $0x28] sm:$0x3f] %vm40, 0.0
    %v45 = vld [vmem:[#allocation8] sm:$0xff]
    %v46 = vld [vmem:[#allocation8 + $0x8] sm:$0xff]
    %v47 = vld [vmem:[#allocation8 + $0x10] sm:$0xff]
    %v48 = vld [vmem:[#allocation8 + $0x18] sm:$0xff]
    %v49 = vld [vmem:[#allocation8 + $0x20] sm:$0xff]
    %v50 = vld [vmem:[#allocation8 + $0x28] sm:$0xff]
    %v51 = vld [vmem:[#allocation8 + $0x30] sm:$0xff]
    %v52 = vld [vmem:[#allocation8 + $0x38] sm:$0xff]
    %vm53 = vcmask 130048
    %v54 = vsel %vm53, %v45, -inf
    %v55 = vsel %vm53, %v47, -inf
    %v56 = vsel %vm53, %v49, -inf
    %v57 = vmax.f32 %v54, %v56
    %v58 = vsel %vm53, %v51, -inf
    %v59 = vmax.f32 %v55, %v58
    %v60 = vmax.f32 %v57, %v59
    %v61 = vsel %vm53, %v46, -inf
    %v62 = vsel %vm53, %v48, -inf
    %v63 = vsel %vm53, %v50, -inf
    %v64 = vmax.f32 %v61, %v63
    %v65 = vsel %vm53, %v52, -inf
    %v66 = vmax.f32 %v62, %v65
    %v67 = vmax.f32 %v64, %v66
    %70 = vrot.lane.b32.xlu0 %v60, 3
    %v71 = vpop.permute.xlu0 %70
    %72 = vrot.lane.b32.xlu0 %v67, 3
    %v73 = vpop.permute.xlu0 %72
    %vm76 = vcmask 154648
    %77 = vst.msk [vmem:[#allocation2 + $0x3] sm:$0xff] %vm76, %v71
    %78 = vst.msk [vmem:[#allocation2 + $0xb] sm:$0xff] %vm76, %v73
    %v79 = vsel %vm53, %v45, 0.0
    %v80 = vsel %vm53, %v47, 0.0
    %v81 = vadd.f32 %v79, %v80
    %v82 = vsel %vm53, %v49, 0.0
    %v83 = vadd.f32 %v81, %v82
    %v84 = vsel %vm53, %v51, 0.0
    %v85 = vadd.f32 %v83, %v84
    %v86 = vsel %vm53, %v46, 0.0
    %v87 = vsel %vm53, %v48, 0.0
    %v88 = vadd.f32 %v86, %v87
    %v89 = vsel %vm53, %v50, 0.0
    %v90 = vadd.f32 %v88, %v89
    %v91 = vsel %vm53, %v52, 0.0
    %v92 = vadd.f32 %v90, %v91
    %v93 = vmul.f32 %v85, 0.25
    %v94 = vmul.f32 %v92, 0.25
    %97 = vrot.lane.b32.xlu0 %v93, 3
    %v98 = vpop.permute.xlu0 %97
    %99 = vrot.lane.b32.xlu0 %v94, 3
    %v100 = vpop.permute.xlu0 %99
    %s103 = scalar_lea.vmem [#allocation2], 24
    %104 = vst.msk [vmem:[%s103 + $0x3] sm:$0xff] %vm76, %v98
    %105 = vst.msk [vmem:[%s103 + $0xb] sm:$0xff] %vm76, %v100
    %s106 = scalar_lea.vmem [#allocation8], 64
    %v107 = vld [vmem:[%s106] sm:$0xff]
    %v108 = vld [vmem:[%s106 + $0x8] sm:$0xff]
    %v109 = vld [vmem:[%s106 + $0x10] sm:$0xff]
    %v110 = vld [vmem:[%s106 + $0x18] sm:$0xff]
    %v111 = vld [vmem:[%s106 + $0x20] sm:$0xff]
    %v112 = vld [vmem:[%s106 + $0x28] sm:$0xff]
    %v113 = vld [vmem:[%s106 + $0x30] sm:$0xff]
    %v114 = vld [vmem:[%s106 + $0x38] sm:$0xff]
    %v115 = vsel %vm53, %v107, -inf
    %v116 = vsel %vm53, %v109, -inf
    %v117 = vsel %vm53, %v111, -inf
    %v118 = vmax.f32 %v115, %v117
    %v119 = vsel %vm53, %v113, -inf
    %v120 = vmax.f32 %v116, %v119
    %v121 = vmax.f32 %v118, %v120
    %v122 = vsel %vm53, %v108, -inf
    %v123 = vsel %vm53, %v110, -inf
    %v124 = vsel %vm53, %v112, -inf
    %v125 = vmax.f32 %v122, %v124
    %v126 = vsel %vm53, %v114, -inf
    %v127 = vmax.f32 %v123, %v126
    %v128 = vmax.f32 %v125, %v127
    %131 = vrot.lane.b32.xlu0 %v121, 25
    %v132 = vpop.permute.xlu0 %131
    %133 = vrot.lane.b32.xlu0 %v128, 25
    %v134 = vpop.permute.xlu0 %133
    %vm137 = vcmask 335048
    %138 = vst.msk [vmem:[#allocation2 + $0x3] sm:$0xff] %vm137, %v132
    %139 = vst.msk [vmem:[#allocation2 + $0xb] sm:$0xff] %vm137, %v134
    %v140 = vsel %vm53, %v107, 0.0
    %v141 = vsel %vm53, %v109, 0.0
    %v142 = vadd.f32 %v140, %v141
    %v143 = vsel %vm53, %v111, 0.0
    %v144 = vadd.f32 %v142, %v143
    %v145 = vsel %vm53, %v113, 0.0
    %v146 = vadd.f32 %v144, %v145
    %v147 = vsel %vm53, %v108, 0.0
    %v148 = vsel %vm53, %v110, 0.0
    %v149 = vadd.f32 %v147, %v148
    %v150 = vsel %vm53, %v112, 0.0
    %v151 = vadd.f32 %v149, %v150
    %v152 = vsel %vm53, %v114, 0.0
    %v153 = vadd.f32 %v151, %v152
    %v154 = vmul.f32 %v146, 0.25
    %v155 = vmul.f32 %v153, 0.25
    %158 = vrot.lane.b32.xlu0 %v154, 25
    %v159 = vpop.permute.xlu0 %158
    %160 = vrot.lane.b32.xlu0 %v155, 25
    %v161 = vpop.permute.xlu0 %160
    %164 = vst.msk [vmem:[%s103 + $0x3] sm:$0xff] %vm137, %v159
    %165 = vst.msk [vmem:[%s103 + $0xb] sm:$0xff] %vm137, %v161
    %s166 = sld [smem:[#allocation4]]
    %s167 = sld [smem:[#allocation4 + $0x1]]
    %s168 = sld [smem:[#allocation4 + $0x2]]
    %s169 = sld [smem:[#allocation4 + $0x3]]
    %s170 = sld [smem:[#allocation4 + $0x4]]
    %s171 = sld [smem:[#allocation4 + $0x5]]
    %s172 = sld [smem:[#allocation4 + $0x6]]
    %s173 = sld [smem:[#allocation4 + $0x7]]
    %s174 = sld [smem:[#allocation4 + $0x8]]
    %s175 = sld [smem:[#allocation4 + $0x9]]
    %s176 = sld [smem:[#allocation4 + $0xa]]
    %s177 = sld [smem:[#allocation4 + $0xb]]
    %s178 = sld [smem:[#allocation4 + $0xc]]
    %s179 = sld [smem:[#allocation4 + $0xd]]
    %s180 = sld [smem:[#allocation4 + $0xe]]
    %s181 = sld [smem:[#allocation4 + $0xf]]
    %s182 = sld [smem:[#allocation4 + $0x10]]
    %s183 = sld [smem:[#allocation4 + $0x11]]
    %s184 = sld [smem:[#allocation4 + $0x12]]
    %s185 = sld [smem:[#allocation4 + $0x13]]
    %s186 = sld [smem:[#allocation4 + $0x14]]
    %s187 = sld [smem:[#allocation4 + $0x15]]
    %s188 = sld [smem:[#allocation4 + $0x16]]
    %s189 = sld [smem:[#allocation4 + $0x17]]
    %s190 = sld [smem:[#allocation4 + $0x18]]
    %s191 = sld [smem:[#allocation4 + $0x19]]
    %s192 = sld [smem:[#allocation4 + $0x1a]]
    %s193 = sld [smem:[#allocation4 + $0x1b]]
    %s194 = sld [smem:[#allocation4 + $0x1c]]
    %s195 = sld [smem:[#allocation4 + $0x1d]]
    %s196 = sld [smem:[#allocation4 + $0x1e]]
    %s197 = sld [smem:[#allocation4 + $0x1f]]
    %s198 = sld [smem:[#allocation4 + $0x20]]
    %s199 = sld [smem:[#allocation4 + $0x21]]
    %s200 = sld [smem:[#allocation4 + $0x22]]
    %s201 = sld [smem:[#allocation4 + $0x23]]
    %s202 = sld [smem:[#allocation4 + $0x24]]
    %s203 = sld [smem:[#allocation4 + $0x25]]
    %s204 = sld [smem:[#allocation4 + $0x26]]
    %s205 = sld [smem:[#allocation4 + $0x27]]
    %s206 = sld [smem:[#allocation4 + $0x28]]
    %s207 = sld [smem:[#allocation4 + $0x29]]
    %s208 = sld [smem:[#allocation4 + $0x2a]]
    %s209 = sld [smem:[#allocation4 + $0x2b]]
    %s210 = sld [smem:[#allocation4 + $0x2c]]
    %s211 = sld [smem:[#allocation4 + $0x2d]]
    %s212 = sld [smem:[#allocation4 + $0x2e]]
    %s213 = sld [smem:[#allocation4 + $0x2f]]
    %s214 = sld [smem:[#allocation4 + $0x30]]
    %s215 = sld [smem:[#allocation4 + $0x31]]
    %s216 = sld [smem:[#allocation4 + $0x32]]
    %s217 = sld [smem:[#allocation4 + $0x33]]
    %s218 = sld [smem:[#allocation4 + $0x34]]
    %s219 = sld [smem:[#allocation4 + $0x35]]
    %s220 = sld [smem:[#allocation4 + $0x36]]
    %s221 = sld [smem:[#allocation4 + $0x37]]
    %s222 = sld [smem:[#allocation4 + $0x38]]
    %s223 = sld [smem:[#allocation4 + $0x39]]
    %s224 = sld [smem:[#allocation4 + $0x3a]]
    %s225 = sld [smem:[#allocation4 + $0x3b]]
    %s226 = sld [smem:[#allocation4 + $0x3c]]
    %s227 = sld [smem:[#allocation4 + $0x3d]]
    %s228 = sld [smem:[#allocation4 + $0x3e]]
    %s229 = sld [smem:[#allocation4 + $0x3f]]
    %s230 = sld [smem:[#allocation4 + $0x40]]
    %s231 = sld [smem:[#allocation4 + $0x41]]
    %s232 = sld [smem:[#allocation4 + $0x42]]
    %s233 = sld [smem:[#allocation4 + $0x43]]
    %s234 = sld [smem:[#allocation4 + $0x44]]
    %s235 = sld [smem:[#allocation4 + $0x45]]
    %s236 = sld [smem:[#allocation4 + $0x46]]
    %s237 = sld [smem:[#allocation4 + $0x47]]
    %s238 = sld [smem:[#allocation4 + $0x48]]
    %s239 = sld [smem:[#allocation4 + $0x49]]
    %s240 = sld [smem:[#allocation4 + $0x4a]]
    %s241 = sld [smem:[#allocation4 + $0x4b]]
    %s242 = sld [smem:[#allocation4 + $0x4c]]
    %s243 = sld [smem:[#allocation4 + $0x4d]]
    %s244 = sld [smem:[#allocation4 + $0x4e]]
    %s245 = sld [smem:[#allocation4 + $0x4f]]
    %s246 = sld [smem:[#allocation4 + $0x50]]
    %s247 = sld [smem:[#allocation4 + $0x51]]
    %s248 = sld [smem:[#allocation4 + $0x52]]
    %s249 = sld [smem:[#allocation4 + $0x53]]
    %s250 = sld [smem:[#allocation4 + $0x54]]
    %s251 = sld [smem:[#allocation4 + $0x55]]
    %s252 = sld [smem:[#allocation4 + $0x56]]
    %s253 = sld [smem:[#allocation4 + $0x57]]
    %s254 = sld [smem:[#allocation4 + $0x58]]
    %s255 = sld [smem:[#allocation4 + $0x59]]
    %s256 = sld [smem:[#allocation4 + $0x5a]]
    %s257 = sld [smem:[#allocation4 + $0x5b]]
    %s258 = sld [smem:[#allocation4 + $0x5c]]
    %s259 = sld [smem:[#allocation4 + $0x5d]]
    %s260 = sld [smem:[#allocation4 + $0x5e]]
    %s261 = sld [smem:[#allocation4 + $0x5f]]
    %s262 = sld [smem:[#allocation4 + $0x60]]
    %s263 = sld [smem:[#allocation4 + $0x61]]
    %v264 = vld [vmem:[#allocation2] sm:$0xff]
    %v265 = vld [vmem:[#allocation2 + $0x8] sm:$0xff]
    %v266 = vld [vmem:[#allocation2 + $0x10] sm:$0x3f]
    %vm267 = vcmask 310272
    %268 = vst.msk [vmem:[#allocation3] sm:$0xff] %vm267, %v264
    %269 = vst.msk [vmem:[#allocation3 + $0x8] sm:$0xff] %vm267, %v265
    %vm270 = vcmask 308224
    %271 = vst.msk [vmem:[#allocation3 + $0x10] sm:$0x3f] %vm270, %v266
    %v272 = vld [vmem:[#allocation3] sm:$0xff]
    %v273 = vld [vmem:[#allocation3 + $0x8] sm:$0xff]
    %v274 = vstv %s166
    %v275 = vmul.f32 %v274, %v272
    %v276 = vmul.f32 %v274, %v273
    %v277 = vadd.f32 %v275, 0.0
    %v278 = vadd.f32 %v276, 0.0
    %v279 = vld [vmem:[#allocation3 + $0x1] sm:$0xff]
    %v280 = vld [vmem:[#allocation3 + $0x9] sm:$0xff]
    %v281 = vstv %s173
    %v282 = vmul.f32 %v281, %v279
    %v283 = vmul.f32 %v281, %v280
    %v284 = vadd.f32 %v282, 0.0
    %v285 = vadd.f32 %v283, 0.0
    %v286 = vld [vmem:[#allocation3 + $0x2] sm:$0xff]
    %v287 = vld [vmem:[#allocation3 + $0xa] sm:$0xff]
    %v288 = vstv %s180
    %v289 = vmul.f32 %v288, %v286
    %v290 = vmul.f32 %v288, %v287
    %v291 = vadd.f32 %v289, 0.0
    %v292 = vadd.f32 %v290, 0.0
    %v293 = vld [vmem:[#allocation3 + $0x3] sm:$0xff]
    %v294 = vld [vmem:[#allocation3 + $0xb] sm:$0xff]
    %v295 = vstv %s187
    %v296 = vmul.f32 %v295, %v293
    %v297 = vmul.f32 %v295, %v294
    %v298 = vadd.f32 %v296, 0.0
    %v299 = vadd.f32 %v297, 0.0
    %v300 = vld [vmem:[#allocation3 + $0x4] sm:$0xff]
    %v301 = vld [vmem:[#allocation3 + $0xc] sm:$0xff]
    %v302 = vstv %s194
    %v303 = vmul.f32 %v302, %v300
    %v304 = vmul.f32 %v302, %v301
    %v305 = vadd.f32 %v277, %v303
    %v306 = vadd.f32 %v278, %v304
    %v307 = vld [vmem:[#allocation3 + $0x5] sm:$0xff]
    %v308 = vld [vmem:[#allocation3 + $0xd] sm:$0xff]
    %v309 = vstv %s201
    %v310 = vmul.f32 %v309, %v307
    %v311 = vmul.f32 %v309, %v308
    %v312 = vadd.f32 %v284, %v310
    %v313 = vadd.f32 %v285, %v311
    %v314 = vld [vmem:[#allocation3 + $0x6] sm:$0xff]
    %v315 = vld [vmem:[#allocation3 + $0xe] sm:$0xff]
    %v316 = vstv %s208
    %v317 = vmul.f32 %v316, %v314
    %v318 = vmul.f32 %v316, %v315
    %v319 = vadd.f32 %v291, %v317
    %v320 = vadd.f32 %v292, %v318
    %v321 = vld [vmem:[#allocation2] sm:$0xff]
    %v322 = vld [vmem:[#allocation2 + $0x8] sm:$0xff]
    %v323 = vld [vmem:[#allocation2 + $0x10] sm:$0x3f]
    %327 = vrot.lane.b32.xlu0 %v321, 127
    %v328 = vpop.permute.xlu0 %327
    %329 = vrot.lane.b32.xlu0 %v322, 127
    %v330 = vpop.permute.xlu0 %329
    %331 = vrot.lane.b32.xlu0 %v323, 127
    %v332 = vpop.permute.xlu0 %331
    %336 = vst.msk [vmem:[#allocation3] sm:$0xff] %vm267, %v328
    %337 = vst.msk [vmem:[#allocation3 + $0x8] sm:$0xff] %vm267, %v330
    %338 = vst.msk [vmem:[#allocation3 + $0x10] sm:$0x3f] %vm270, %v332
    %v339 = vld [vmem:[#allocation3] sm:$0xff]
    %v340 = vld [vmem:[#allocation3 + $0x8] sm:$0xff]
    %v341 = vstv %s167
    %v342 = vmul.f32 %v341, %v339
    %v343 = vmul.f32 %v341, %v340
    %v344 = vadd.f32 %v298, %v342
    %v345 = vadd.f32 %v299, %v343
    %v346 = vld [vmem:[#allocation3 + $0x1] sm:$0xff]
    %v347 = vld [vmem:[#allocation3 + $0x9] sm:$0xff]
    %v348 = vstv %s174
    %v349 = vmul.f32 %v348, %v346
    %v350 = vmul.f32 %v348, %v347
    %v351 = vadd.f32 %v305, %v349
    %v352 = vadd.f32 %v306, %v350
    %v353 = vld [vmem:[#allocation3 + $0x2] sm:$0xff]
    %v354 = vld [vmem:[#allocation3 + $0xa] sm:$0xff]
    %v355 = vstv %s181
    %v356 = vmul.f32 %v355, %v353
    %v357 = vmul.f32 %v355, %v354
    %v358 = vadd.f32 %v312, %v356
    %v359 = vadd.f32 %v313, %v357
    %v360 = vld [vmem:[#allocation3 + $0x3] sm:$0xff]
    %v361 = vld [vmem:[#allocation3 + $0xb] sm:$0xff]
    %v362 = vstv %s188
    %v363 = vmul.f32 %v362, %v360
    %v364 = vmul.f32 %v362, %v361
    %v365 = vadd.f32 %v319, %v363
    %v366 = vadd.f32 %v320, %v364
    %v367 = vld [vmem:[#allocation3 + $0x4] sm:$0xff]
    %v368 = vld [vmem:[#allocation3 + $0xc] sm:$0xff]
    %v369 = vstv %s195
    %v370 = vmul.f32 %v369, %v367
    %v371 = vmul.f32 %v369, %v368
    %v372 = vadd.f32 %v344, %v370
    %v373 = vadd.f32 %v345, %v371
    %v374 = vld [vmem:[#allocation3 + $0x5] sm:$0xff]
    %v375 = vld [vmem:[#allocation3 + $0xd] sm:$0xff]
    %v376 = vstv %s202
    %v377 = vmul.f32 %v376, %v374
    %v378 = vmul.f32 %v376, %v375
    %v379 = vadd.f32 %v351, %v377
    %v380 = vadd.f32 %v352, %v378
    %v381 = vld [vmem:[#allocation3 + $0x6] sm:$0xff]
    %v382 = vld [vmem:[#allocation3 + $0xe] sm:$0xff]
    %v383 = vstv %s209
    %v384 = vmul.f32 %v383, %v381
    %v385 = vmul.f32 %v383, %v382
    %v386 = vadd.f32 %v358, %v384
    %v387 = vadd.f32 %v359, %v385
    %v388 = vld [vmem:[#allocation2] sm:$0xff]
    %v389 = vld [vmem:[#allocation2 + $0x8] sm:$0xff]
    %v390 = vld [vmem:[#allocation2 + $0x10] sm:$0x3f]
    %394 = vrot.lane.b32.xlu0 %v388, 126
    %v395 = vpop.permute.xlu0 %394
    %396 = vrot.lane.b32.xlu0 %v389, 126
    %v397 = vpop.permute.xlu0 %396
    %398 = vrot.lane.b32.xlu0 %v390, 126
    %v399 = vpop.permute.xlu0 %398
    %403 = vst.msk [vmem:[#allocation3] sm:$0xff] %vm267, %v395
    %404 = vst.msk [vmem:[#allocation3 + $0x8] sm:$0xff] %vm267, %v397
    %405 = vst.msk [vmem:[#allocation3 + $0x10] sm:$0x3f] %vm270, %v399
    %v406 = vld [vmem:[#allocation3] sm:$0xff]
    %v407 = vld [vmem:[#allocation3 + $0x8] sm:$0xff]
    %v408 = vstv %s168
    %v409 = vmul.f32 %v408, %v406
    %v410 = vmul.f32 %v408, %v407
    %v411 = vadd.f32 %v365, %v409
    %v412 = vadd.f32 %v366, %v410
    %v413 = vld [vmem:[#allocation3 + $0x1] sm:$0xff]
    %v414 = vld [vmem:[#allocation3 + $0x9] sm:$0xff]
    %v415 = vstv %s175
    %v416 = vmul.f32 %v415, %v413
    %v417 = vmul.f32 %v415, %v414
    %v418 = vadd.f32 %v372, %v416
    %v419 = vadd.f32 %v373, %v417
    %v420 = vld [vmem:[#allocation3 + $0x2] sm:$0xff]
    %v421 = vld [vmem:[#allocation3 + $0xa] sm:$0xff]
    %v422 = vstv %s182
    %v423 = vmul.f32 %v422, %v420
    %v424 = vmul.f32 %v422, %v421
    %v425 = vadd.f32 %v379, %v423
    %v426 = vadd.f32 %v380, %v424
    %v427 = vld [vmem:[#allocation3 + $0x3] sm:$0xff]
    %v428 = vld [vmem:[#allocation3 + $0xb] sm:$0xff]
    %v429 = vstv %s189
    %v430 = vmul.f32 %v429, %v427
    %v431 = vmul.f32 %v429, %v428
    %v432 = vadd.f32 %v386, %v430
    %v433 = vadd.f32 %v387, %v431
    %v434 = vld [vmem:[#allocation3 + $0x4] sm:$0xff]
    %v435 = vld [vmem:[#allocation3 + $0xc] sm:$0xff]
    %v436 = vstv %s196
    %v437 = vmul.f32 %v436, %v434
    %v438 = vmul.f32 %v436, %v435
    %v439 = vadd.f32 %v411, %v437
    %v440 = vadd.f32 %v412, %v438
    %v441 = vld [vmem:[#allocation3 + $0x5] sm:$0xff]
    %v442 = vld [vmem:[#allocation3 + $0xd] sm:$0xff]
    %v443 = vstv %s203
    %v444 = vmul.f32 %v443, %v441
    %v445 = vmul.f32 %v443, %v442
    %v446 = vadd.f32 %v418, %v444
    %v447 = vadd.f32 %v419, %v445
    %v448 = vld [vmem:[#allocation3 + $0x6] sm:$0xff]
    %v449 = vld [vmem:[#allocation3 + $0xe] sm:$0xff]
    %v450 = vstv %s210
    %v451 = vmul.f32 %v450, %v448
    %v452 = vmul.f32 %v450, %v449
    %v453 = vadd.f32 %v425, %v451
    %v454 = vadd.f32 %v426, %v452
    %v455 = vld [vmem:[#allocation2] sm:$0xff]
    %v456 = vld [vmem:[#allocation2 + $0x8] sm:$0xff]
    %v457 = vld [vmem:[#allocation2 + $0x10] sm:$0x3f]
    %461 = vrot.lane.b32.xlu0 %v455, 125
    %v462 = vpop.permute.xlu0 %461
    %463 = vrot.lane.b32.xlu0 %v456, 125
    %v464 = vpop.permute.xlu0 %463
    %465 = vrot.lane.b32.xlu0 %v457, 125
    %v466 = vpop.permute.xlu0 %465
    %470 = vst.msk [vmem:[#allocation3] sm:$0xff] %vm267, %v462
    %471 = vst.msk [vmem:[#allocation3 + $0x8] sm:$0xff] %vm267, %v464
    %472 = vst.msk [vmem:[#allocation3 + $0x10] sm:$0x3f] %vm270, %v466
    %v473 = vld [vmem:[#allocation3] sm:$0xff]
    %v474 = vld [vmem:[#allocation3 + $0x8] sm:$0xff]
    %v475 = vstv %s169
    %v476 = vmul.f32 %v475, %v473
    %v477 = vmul.f32 %v475, %v474
    %v478 = vadd.f32 %v432, %v476
    %v479 = vadd.f32 %v433, %v477
    %v480 = vld [vmem:[#allocation3 + $0x1] sm:$0xff]
    %v481 = vld [vmem:[#allocation3 + $0x9] sm:$0xff]
    %v482 = vstv %s176
    %v483 = vmul.f32 %v482, %v480
    %v484 = vmul.f32 %v482, %v481
    %v485 = vadd.f32 %v439, %v483
    %v486 = vadd.f32 %v440, %v484
    %v487 = vld [vmem:[#allocation3 + $0x2] sm:$0xff]
    %v488 = vld [vmem:[#allocation3 + $0xa] sm:$0xff]
    %v489 = vstv %s183
    %v490 = vmul.f32 %v489, %v487
    %v491 = vmul.f32 %v489, %v488
    %v492 = vadd.f32 %v446, %v490
    %v493 = vadd.f32 %v447, %v491
    %v494 = vld [vmem:[#allocation3 + $0x3] sm:$0xff]
    %v495 = vld [vmem:[#allocation3 + $0xb] sm:$0xff]
    %v496 = vstv %s190
    %v497 = vmul.f32 %v496, %v494
    %v498 = vmul.f32 %v496, %v495
    %v499 = vadd.f32 %v453, %v497
    %v500 = vadd.f32 %v454, %v498
    %v501 = vld [vmem:[#allocation3 + $0x4] sm:$0xff]
    %v502 = vld [vmem:[#allocation3 + $0xc] sm:$0xff]
    %v503 = vstv %s197
    %v504 = vmul.f32 %v503, %v501
    %v505 = vmul.f32 %v503, %v502
    %v506 = vadd.f32 %v478, %v504
    %v507 = vadd.f32 %v479, %v505
    %v508 = vld [vmem:[#allocation3 + $0x5] sm:$0xff]
    %v509 = vld [vmem:[#allocation3 + $0xd] sm:$0xff]
    %v510 = vstv %s204
    %v511 = vmul.f32 %v510, %v508
    %v512 = vmul.f32 %v510, %v509
    %v513 = vadd.f32 %v485, %v511
    %v514 = vadd.f32 %v486, %v512
    %v515 = vld [vmem:[#allocation3 + $0x6] sm:$0xff]
    %v516 = vld [vmem:[#allocation3 + $0xe] sm:$0xff]
    %v517 = vstv %s211
    %v518 = vmul.f32 %v517, %v515
    %v519 = vmul.f32 %v517, %v516
    %v520 = vadd.f32 %v492, %v518
    %v521 = vadd.f32 %v493, %v519
    %v522 = vld [vmem:[#allocation2] sm:$0xff]
    %v523 = vld [vmem:[#allocation2 + $0x8] sm:$0xff]
    %v524 = vld [vmem:[#allocation2 + $0x10] sm:$0x3f]
    %528 = vrot.lane.b32.xlu0 %v522, 124
    %v529 = vpop.permute.xlu0 %528
    %530 = vrot.lane.b32.xlu0 %v523, 124
    %v531 = vpop.permute.xlu0 %530
    %532 = vrot.lane.b32.xlu0 %v524, 124
    %v533 = vpop.permute.xlu0 %532
    %537 = vst.msk [vmem:[#allocation3] sm:$0xff] %vm267, %v529
    %538 = vst.msk [vmem:[#allocation3 + $0x8] sm:$0xff] %vm267, %v531
    %539 = vst.msk [vmem:[#allocation3 + $0x10] sm:$0x3f] %vm270, %v533
    %v540 = vld [vmem:[#allocation3] sm:$0xff]
    %v541 = vld [vmem:[#allocation3 + $0x8] sm:$0xff]
    %v542 = vstv %s170
    %v543 = vmul.f32 %v542, %v540
    %v544 = vmul.f32 %v542, %v541
    %v545 = vadd.f32 %v499, %v543
    %v546 = vadd.f32 %v500, %v544
    %v547 = vld [vmem:[#allocation3 + $0x1] sm:$0xff]
    %v548 = vld [vmem:[#allocation3 + $0x9] sm:$0xff]
    %v549 = vstv %s177
    %v550 = vmul.f32 %v549, %v547
    %v551 = vmul.f32 %v549, %v548
    %v552 = vadd.f32 %v506, %v550
    %v553 = vadd.f32 %v507, %v551
    %v554 = vld [vmem:[#allocation3 + $0x2] sm:$0xff]
    %v555 = vld [vmem:[#allocation3 + $0xa] sm:$0xff]
    %v556 = vstv %s184
    %v557 = vmul.f32 %v556, %v554
    %v558 = vmul.f32 %v556, %v555
    %v559 = vadd.f32 %v513, %v557
    %v560 = vadd.f32 %v514, %v558
    %v561 = vld [vmem:[#allocation3 + $0x3] sm:$0xff]
    %v562 = vld [vmem:[#allocation3 + $0xb] sm:$0xff]
    %v563 = vstv %s191
    %v564 = vmul.f32 %v563, %v561
    %v565 = vmul.f32 %v563, %v562
    %v566 = vadd.f32 %v520, %v564
    %v567 = vadd.f32 %v521, %v565
    %v568 = vld [vmem:[#allocation3 + $0x4] sm:$0xff]
    %v569 = vld [vmem:[#allocation3 + $0xc] sm:$0xff]
    %v570 = vstv %s198
    %v571 = vmul.f32 %v570, %v568
    %v572 = vmul.f32 %v570, %v569
    %v573 = vadd.f32 %v545, %v571
    %v574 = vadd.f32 %v546, %v572
    %v575 = vld [vmem:[#allocation3 + $0x5] sm:$0xff]
    %v576 = vld [vmem:[#allocation3 + $0xd] sm:$0xff]
    %v577 = vstv %s205
    %v578 = vmul.f32 %v577, %v575
    %v579 = vmul.f32 %v577, %v576
    %v580 = vadd.f32 %v552, %v578
    %v581 = vadd.f32 %v553, %v579
    %v582 = vld [vmem:[#allocation3 + $0x6] sm:$0xff]
    %v583 = vld [vmem:[#allocation3 + $0xe] sm:$0xff]
    %v584 = vstv %s212
    %v585 = vmul.f32 %v584, %v582
    %v586 = vmul.f32 %v584, %v583
    %v587 = vadd.f32 %v559, %v585
    %v588 = vadd.f32 %v560, %v586
    %v589 = vld [vmem:[#allocation2] sm:$0xff]
    %v590 = vld [vmem:[#allocation2 + $0x8] sm:$0xff]
    %v591 = vld [vmem:[#allocation2 + $0x10] sm:$0x3f]
    %595 = vrot.lane.b32.xlu0 %v589, 123
    %v596 = vpop.permute.xlu0 %595
    %597 = vrot.lane.b32.xlu0 %v590, 123
    %v598 = vpop.permute.xlu0 %597
    %599 = vrot.lane.b32.xlu0 %v591, 123
    %v600 = vpop.permute.xlu0 %599
    %604 = vst.msk [vmem:[#allocation3] sm:$0xff] %vm267, %v596
    %605 = vst.msk [vmem:[#allocation3 + $0x8] sm:$0xff] %vm267, %v598
    %606 = vst.msk [vmem:[#allocation3 + $0x10] sm:$0x3f] %vm270, %v600
    %v607 = vld [vmem:[#allocation3] sm:$0xff]
    %v608 = vld [vmem:[#allocation3 + $0x8] sm:$0xff]
    %v609 = vstv %s171
    %v610 = vmul.f32 %v609, %v607
    %v611 = vmul.f32 %v609, %v608
    %v612 = vadd.f32 %v566, %v610
    %v613 = vadd.f32 %v567, %v611
    %v614 = vld [vmem:[#allocation3 + $0x1] sm:$0xff]
    %v615 = vld [vmem:[#allocation3 + $0x9] sm:$0xff]
    %v616 = vstv %s178
    %v617 = vmul.f32 %v616, %v614
    %v618 = vmul.f32 %v616, %v615
    %v619 = vadd.f32 %v573, %v617
    %v620 = vadd.f32 %v574, %v618
    %v621 = vld [vmem:[#allocation3 + $0x2] sm:$0xff]
    %v622 = vld [vmem:[#allocation3 + $0xa] sm:$0xff]
    %v623 = vstv %s185
    %v624 = vmul.f32 %v623, %v621
    %v625 = vmul.f32 %v623, %v622
    %v626 = vadd.f32 %v580, %v624
    %v627 = vadd.f32 %v581, %v625
    %v628 = vld [vmem:[#allocation3 + $0x3] sm:$0xff]
    %v629 = vld [vmem:[#allocation3 + $0xb] sm:$0xff]
    %v630 = vstv %s192
    %v631 = vmul.f32 %v630, %v628
    %v632 = vmul.f32 %v630, %v629
    %v633 = vadd.f32 %v587, %v631
    %v634 = vadd.f32 %v588, %v632
    %v635 = vld [vmem:[#allocation3 + $0x4] sm:$0xff]
    %v636 = vld [vmem:[#allocation3 + $0xc] sm:$0xff]
    %v637 = vstv %s199
    %v638 = vmul.f32 %v637, %v635
    %v639 = vmul.f32 %v637, %v636
    %v640 = vadd.f32 %v612, %v638
    %v641 = vadd.f32 %v613, %v639
    %v642 = vld [vmem:[#allocation3 + $0x5] sm:$0xff]
    %v643 = vld [vmem:[#allocation3 + $0xd] sm:$0xff]
    %v644 = vstv %s206
    %v645 = vmul.f32 %v644, %v642
    %v646 = vmul.f32 %v644, %v643
    %v647 = vadd.f32 %v619, %v645
    %v648 = vadd.f32 %v620, %v646
    %v649 = vld [vmem:[#allocation3 + $0x6] sm:$0xff]
    %v650 = vld [vmem:[#allocation3 + $0xe] sm:$0xff]
    %v651 = vstv %s213
    %v652 = vmul.f32 %v651, %v649
    %v653 = vmul.f32 %v651, %v650
    %v654 = vadd.f32 %v626, %v652
    %v655 = vadd.f32 %v627, %v653
    %v656 = vld [vmem:[#allocation2] sm:$0xff]
    %v657 = vld [vmem:[#allocation2 + $0x8] sm:$0xff]
    %v658 = vld [vmem:[#allocation2 + $0x10] sm:$0x3f]
    %662 = vrot.lane.b32.xlu0 %v656, 122
    %v663 = vpop.permute.xlu0 %662
    %664 = vrot.lane.b32.xlu0 %v657, 122
    %v665 = vpop.permute.xlu0 %664
    %666 = vrot.lane.b32.xlu0 %v658, 122
    %v667 = vpop.permute.xlu0 %666
    %671 = vst.msk [vmem:[#allocation3] sm:$0xff] %vm267, %v663
    %672 = vst.msk [vmem:[#allocation3 + $0x8] sm:$0xff] %vm267, %v665
    %673 = vst.msk [vmem:[#allocation3 + $0x10] sm:$0x3f] %vm270, %v667
    %v674 = vld [vmem:[#allocation3] sm:$0xff]
    %v675 = vld [vmem:[#allocation3 + $0x8] sm:$0xff]
    %v676 = vstv %s172
    %v677 = vmul.f32 %v676, %v674
    %v678 = vmul.f32 %v676, %v675
    %v679 = vadd.f32 %v633, %v677
    %v680 = vadd.f32 %v634, %v678
    %v681 = vld [vmem:[#allocation3 + $0x1] sm:$0xff]
    %v682 = vld [vmem:[#allocation3 + $0x9] sm:$0xff]
    %v683 = vstv %s179
    %v684 = vmul.f32 %v683, %v681
    %v685 = vmul.f32 %v683, %v682
    %v686 = vadd.f32 %v640, %v684
    %v687 = vadd.f32 %v641, %v685
    %v688 = vld [vmem:[#allocation3 + $0x2] sm:$0xff]
    %v689 = vld [vmem:[#allocation3 + $0xa] sm:$0xff]
    %v690 = vstv %s186
    %v691 = vmul.f32 %v690, %v688
    %v692 = vmul.f32 %v690, %v689
    %v693 = vadd.f32 %v647, %v691
    %v694 = vadd.f32 %v648, %v692
    %v695 = vld [vmem:[#allocation3 + $0x3] sm:$0xff]
    %v696 = vld [vmem:[#allocation3 + $0xb] sm:$0xff]
    %v697 = vstv %s193
    %v698 = vmul.f32 %v697, %v695
    %v699 = vmul.f32 %v697, %v696
    %v700 = vadd.f32 %v654, %v698
    %v701 = vadd.f32 %v655, %v699
    %v702 = vld [vmem:[#allocation3 + $0x4] sm:$0xff]
    %v703 = vld [vmem:[#allocation3 + $0xc] sm:$0xff]
    %v704 = vstv %s200
    %v705 = vmul.f32 %v704, %v702
    %v706 = vmul.f32 %v704, %v703
    %v707 = vadd.f32 %v679, %v705
    %v708 = vadd.f32 %v680, %v706
    %v709 = vld [vmem:[#allocation3 + $0x5] sm:$0xff]
    %v710 = vld [vmem:[#allocation3 + $0xd] sm:$0xff]
    %v711 = vstv %s207
    %v712 = vmul.f32 %v711, %v709
    %v713 = vmul.f32 %v711, %v710
    %v714 = vadd.f32 %v686, %v712
    %v715 = vadd.f32 %v687, %v713
    %v716 = vld [vmem:[#allocation3 + $0x6] sm:$0xff]
    %v717 = vld [vmem:[#allocation3 + $0xe] sm:$0xff]
    %v718 = vstv %s214
    %v719 = vmul.f32 %v718, %v716
    %v720 = vmul.f32 %v718, %v717
    %v721 = vadd.f32 %v693, %v719
    %v722 = vadd.f32 %v694, %v720
    %v723 = vld [vmem:[%s103] sm:$0xff]
    %v724 = vld [vmem:[%s103 + $0x8] sm:$0xff]
    %v725 = vld [vmem:[%s103 + $0x10] sm:$0x3f]
    %726 = vst.msk [vmem:[#allocation3] sm:$0xff] %vm267, %v723
    %727 = vst.msk [vmem:[#allocation3 + $0x8] sm:$0xff] %vm267, %v724
    %728 = vst.msk [vmem:[#allocation3 + $0x10] sm:$0x3f] %vm270, %v725
    %v729 = vld [vmem:[#allocation3] sm:$0xff]
    %v730 = vld [vmem:[#allocation3 + $0x8] sm:$0xff]
    %v731 = vstv %s215
    %v732 = vmul.f32 %v731, %v729
    %v733 = vmul.f32 %v731, %v730
    %v734 = vadd.f32 %v700, %v732
    %v735 = vadd.f32 %v701, %v733
    %v736 = vld [vmem:[#allocation3 + $0x1] sm:$0xff]
    %v737 = vld [vmem:[#allocation3 + $0x9] sm:$0xff]
    %v738 = vstv %s222
    %v739 = vmul.f32 %v738, %v736
    %v740 = vmul.f32 %v738, %v737
    %v741 = vadd.f32 %v707, %v739
    %v742 = vadd.f32 %v708, %v740
    %v743 = vld [vmem:[#allocation3 + $0x2] sm:$0xff]
    %v744 = vld [vmem:[#allocation3 + $0xa] sm:$0xff]
    %v745 = vstv %s229
    %v746 = vmul.f32 %v745, %v743
    %v747 = vmul.f32 %v745, %v744
    %v748 = vadd.f32 %v714, %v746
    %v749 = vadd.f32 %v715, %v747
    %v750 = vld [vmem:[#allocation3 + $0x3] sm:$0xff]
    %v751 = vld [vmem:[#allocation3 + $0xb] sm:$0xff]
    %v752 = vstv %s236
    %v753 = vmul.f32 %v752, %v750
    %v754 = vmul.f32 %v752, %v751
    %v755 = vadd.f32 %v721, %v753
    %v756 = vadd.f32 %v722, %v754
    %v757 = vld [vmem:[#allocation3 + $0x4] sm:$0xff]
    %v758 = vld [vmem:[#allocation3 + $0xc] sm:$0xff]
    %v759 = vstv %s243
    %v760 = vmul.f32 %v759, %v757
    %v761 = vmul.f32 %v759, %v758
    %v762 = vadd.f32 %v734, %v760
    %v763 = vadd.f32 %v735, %v761
    %v764 = vld [vmem:[#allocation3 + $0x5] sm:$0xff]
    %v765 = vld [vmem:[#allocation3 + $0xd] sm:$0xff]
    %v766 = vstv %s250
    %v767 = vmul.f32 %v766, %v764
    %v768 = vmul.f32 %v766, %v765
    %v769 = vadd.f32 %v741, %v767
    %v770 = vadd.f32 %v742, %v768
    %v771 = vld [vmem:[#allocation3 + $0x6] sm:$0xff]
    %v772 = vld [vmem:[#allocation3 + $0xe] sm:$0xff]
    %v773 = vstv %s257
    %v774 = vmul.f32 %v773, %v771
    %v775 = vmul.f32 %v773, %v772
    %v776 = vadd.f32 %v748, %v774
    %v777 = vadd.f32 %v749, %v775
    %v778 = vld [vmem:[%s103] sm:$0xff]
    %v779 = vld [vmem:[%s103 + $0x8] sm:$0xff]
    %v780 = vld [vmem:[%s103 + $0x10] sm:$0x3f]
    %784 = vrot.lane.b32.xlu0 %v778, 127
    %v785 = vpop.permute.xlu0 %784
    %786 = vrot.lane.b32.xlu0 %v779, 127
    %v787 = vpop.permute.xlu0 %786
    %788 = vrot.lane.b32.xlu0 %v780, 127
    %v789 = vpop.permute.xlu0 %788
    %793 = vst.msk [vmem:[#allocation3] sm:$0xff] %vm267, %v785
    %794 = vst.msk [vmem:[#allocation3 + $0x8] sm:$0xff] %vm267, %v787
    %795 = vst.msk [vmem:[#allocation3 + $0x10] sm:$0x3f] %vm270, %v789
    %v796 = vld [vmem:[#allocation3] sm:$0xff]
    %v797 = vld [vmem:[#allocation3 + $0x8] sm:$0xff]
    %v798 = vstv %s216
    %v799 = vmul.f32 %v798, %v796
    %v800 = vmul.f32 %v798, %v797
    %v801 = vadd.f32 %v755, %v799
    %v802 = vadd.f32 %v756, %v800
    %v803 = vld [vmem:[#allocation3 + $0x1] sm:$0xff]
    %v804 = vld [vmem:[#allocation3 + $0x9] sm:$0xff]
    %v805 = vstv %s223
    %v806 = vmul.f32 %v805, %v803
    %v807 = vmul.f32 %v805, %v804
    %v808 = vadd.f32 %v762, %v806
    %v809 = vadd.f32 %v763, %v807
    %v810 = vld [vmem:[#allocation3 + $0x2] sm:$0xff]
    %v811 = vld [vmem:[#allocation3 + $0xa] sm:$0xff]
    %v812 = vstv %s230
    %v813 = vmul.f32 %v812, %v810
    %v814 = vmul.f32 %v812, %v811
    %v815 = vadd.f32 %v769, %v813
    %v816 = vadd.f32 %v770, %v814
    %v817 = vld [vmem:[#allocation3 + $0x3] sm:$0xff]
    %v818 = vld [vmem:[#allocation3 + $0xb] sm:$0xff]
    %v819 = vstv %s237
    %v820 = vmul.f32 %v819, %v817
    %v821 = vmul.f32 %v819, %v818
    %v822 = vadd.f32 %v776, %v820
    %v823 = vadd.f32 %v777, %v821
    %v824 = vld [vmem:[#allocation3 + $0x4] sm:$0xff]
    %v825 = vld [vmem:[#allocation3 + $0xc] sm:$0xff]
    %v826 = vstv %s244
    %v827 = vmul.f32 %v826, %v824
    %v828 = vmul.f32 %v826, %v825
    %v829 = vadd.f32 %v801, %v827
    %v830 = vadd.f32 %v802, %v828
    %v831 = vld [vmem:[#allocation3 + $0x5] sm:$0xff]
    %v832 = vld [vmem:[#allocation3 + $0xd] sm:$0xff]
    %v833 = vstv %s251
    %v834 = vmul.f32 %v833, %v831
    %v835 = vmul.f32 %v833, %v832
    %v836 = vadd.f32 %v808, %v834
    %v837 = vadd.f32 %v809, %v835
    %v838 = vld [vmem:[#allocation3 + $0x6] sm:$0xff]
    %v839 = vld [vmem:[#allocation3 + $0xe] sm:$0xff]
    %v840 = vstv %s258
    %v841 = vmul.f32 %v840, %v838
    %v842 = vmul.f32 %v840, %v839
    %v843 = vadd.f32 %v815, %v841
    %v844 = vadd.f32 %v816, %v842
    %v845 = vld [vmem:[%s103] sm:$0xff]
    %v846 = vld [vmem:[%s103 + $0x8] sm:$0xff]
    %v847 = vld [vmem:[%s103 + $0x10] sm:$0x3f]
    %851 = vrot.lane.b32.xlu0 %v845, 126
    %v852 = vpop.permute.xlu0 %851
    %853 = vrot.lane.b32.xlu0 %v846, 126
    %v854 = vpop.permute.xlu0 %853
    %855 = vrot.lane.b32.xlu0 %v847, 126
    %v856 = vpop.permute.xlu0 %855
    %860 = vst.msk [vmem:[#allocation3] sm:$0xff] %vm267, %v852
    %861 = vst.msk [vmem:[#allocation3 + $0x8] sm:$0xff] %vm267, %v854
    %862 = vst.msk [vmem:[#allocation3 + $0x10] sm:$0x3f] %vm270, %v856
    %v863 = vld [vmem:[#allocation3] sm:$0xff]
    %v864 = vld [vmem:[#allocation3 + $0x8] sm:$0xff]
    %v865 = vstv %s217
    %v866 = vmul.f32 %v865, %v863
    %v867 = vmul.f32 %v865, %v864
    %v868 = vadd.f32 %v822, %v866
    %v869 = vadd.f32 %v823, %v867
    %v870 = vld [vmem:[#allocation3 + $0x1] sm:$0xff]
    %v871 = vld [vmem:[#allocation3 + $0x9] sm:$0xff]
    %v872 = vstv %s224
    %v873 = vmul.f32 %v872, %v870
    %v874 = vmul.f32 %v872, %v871
    %v875 = vadd.f32 %v829, %v873
    %v876 = vadd.f32 %v830, %v874
    %v877 = vld [vmem:[#allocation3 + $0x2] sm:$0xff]
    %v878 = vld [vmem:[#allocation3 + $0xa] sm:$0xff]
    %v879 = vstv %s231
    %v880 = vmul.f32 %v879, %v877
    %v881 = vmul.f32 %v879, %v878
    %v882 = vadd.f32 %v836, %v880
    %v883 = vadd.f32 %v837, %v881
    %v884 = vld [vmem:[#allocation3 + $0x3] sm:$0xff]
    %v885 = vld [vmem:[#allocation3 + $0xb] sm:$0xff]
    %v886 = vstv %s238
    %v887 = vmul.f32 %v886, %v884
    %v888 = vmul.f32 %v886, %v885
    %v889 = vadd.f32 %v843, %v887
    %v890 = vadd.f32 %v844, %v888
    %v891 = vld [vmem:[#allocation3 + $0x4] sm:$0xff]
    %v892 = vld [vmem:[#allocation3 + $0xc] sm:$0xff]
    %v893 = vstv %s245
    %v894 = vmul.f32 %v893, %v891
    %v895 = vmul.f32 %v893, %v892
    %v896 = vadd.f32 %v868, %v894
    %v897 = vadd.f32 %v869, %v895
    %v898 = vld [vmem:[#allocation3 + $0x5] sm:$0xff]
    %v899 = vld [vmem:[#allocation3 + $0xd] sm:$0xff]
    %v900 = vstv %s252
    %v901 = vmul.f32 %v900, %v898
    %v902 = vmul.f32 %v900, %v899
    %v903 = vadd.f32 %v875, %v901
    %v904 = vadd.f32 %v876, %v902
    %v905 = vld [vmem:[#allocation3 + $0x6] sm:$0xff]
    %v906 = vld [vmem:[#allocation3 + $0xe] sm:$0xff]
    %v907 = vstv %s259
    %v908 = vmul.f32 %v907, %v905
    %v909 = vmul.f32 %v907, %v906
    %v910 = vadd.f32 %v882, %v908
    %v911 = vadd.f32 %v883, %v909
    %v912 = vld [vmem:[%s103] sm:$0xff]
    %v913 = vld [vmem:[%s103 + $0x8] sm:$0xff]
    %v914 = vld [vmem:[%s103 + $0x10] sm:$0x3f]
    %918 = vrot.lane.b32.xlu0 %v912, 125
    %v919 = vpop.permute.xlu0 %918
    %920 = vrot.lane.b32.xlu0 %v913, 125
    %v921 = vpop.permute.xlu0 %920
    %922 = vrot.lane.b32.xlu0 %v914, 125
    %v923 = vpop.permute.xlu0 %922
    %927 = vst.msk [vmem:[#allocation3] sm:$0xff] %vm267, %v919
    %928 = vst.msk [vmem:[#allocation3 + $0x8] sm:$0xff] %vm267, %v921
    %929 = vst.msk [vmem:[#allocation3 + $0x10] sm:$0x3f] %vm270, %v923
    %v930 = vld [vmem:[#allocation3] sm:$0xff]
    %v931 = vld [vmem:[#allocation3 + $0x8] sm:$0xff]
    %v932 = vstv %s218
    %v933 = vmul.f32 %v932, %v930
    %v934 = vmul.f32 %v932, %v931
    %v935 = vadd.f32 %v889, %v933
    %v936 = vadd.f32 %v890, %v934
    %v937 = vld [vmem:[#allocation3 + $0x1] sm:$0xff]
    %v938 = vld [vmem:[#allocation3 + $0x9] sm:$0xff]
    %v939 = vstv %s225
    %v940 = vmul.f32 %v939, %v937
    %v941 = vmul.f32 %v939, %v938
    %v942 = vadd.f32 %v896, %v940
    %v943 = vadd.f32 %v897, %v941
    %v944 = vld [vmem:[#allocation3 + $0x2] sm:$0xff]
    %v945 = vld [vmem:[#allocation3 + $0xa] sm:$0xff]
    %v946 = vstv %s232
    %v947 = vmul.f32 %v946, %v944
    %v948 = vmul.f32 %v946, %v945
    %v949 = vadd.f32 %v903, %v947
    %v950 = vadd.f32 %v904, %v948
    %v951 = vld [vmem:[#allocation3 + $0x3] sm:$0xff]
    %v952 = vld [vmem:[#allocation3 + $0xb] sm:$0xff]
    %v953 = vstv %s239
    %v954 = vmul.f32 %v953, %v951
    %v955 = vmul.f32 %v953, %v952
    %v956 = vadd.f32 %v910, %v954
    %v957 = vadd.f32 %v911, %v955
    %v958 = vld [vmem:[#allocation3 + $0x4] sm:$0xff]
    %v959 = vld [vmem:[#allocation3 + $0xc] sm:$0xff]
    %v960 = vstv %s246
    %v961 = vmul.f32 %v960, %v958
    %v962 = vmul.f32 %v960, %v959
    %v963 = vadd.f32 %v935, %v961
    %v964 = vadd.f32 %v936, %v962
    %v965 = vld [vmem:[#allocation3 + $0x5] sm:$0xff]
    %v966 = vld [vmem:[#allocation3 + $0xd] sm:$0xff]
    %v967 = vstv %s253
    %v968 = vmul.f32 %v967, %v965
    %v969 = vmul.f32 %v967, %v966
    %v970 = vadd.f32 %v942, %v968
    %v971 = vadd.f32 %v943, %v969
    %v972 = vld [vmem:[#allocation3 + $0x6] sm:$0xff]
    %v973 = vld [vmem:[#allocation3 + $0xe] sm:$0xff]
    %v974 = vstv %s260
    %v975 = vmul.f32 %v974, %v972
    %v976 = vmul.f32 %v974, %v973
    %v977 = vadd.f32 %v949, %v975
    %v978 = vadd.f32 %v950, %v976
    %v979 = vld [vmem:[%s103] sm:$0xff]
    %v980 = vld [vmem:[%s103 + $0x8] sm:$0xff]
    %v981 = vld [vmem:[%s103 + $0x10] sm:$0x3f]
    %985 = vrot.lane.b32.xlu0 %v979, 124
    %v986 = vpop.permute.xlu0 %985
    %987 = vrot.lane.b32.xlu0 %v980, 124
    %v988 = vpop.permute.xlu0 %987
    %989 = vrot.lane.b32.xlu0 %v981, 124
    %v990 = vpop.permute.xlu0 %989
    %994 = vst.msk [vmem:[#allocation3] sm:$0xff] %vm267, %v986
    %995 = vst.msk [vmem:[#allocation3 + $0x8] sm:$0xff] %vm267, %v988
    %996 = vst.msk [vmem:[#allocation3 + $0x10] sm:$0x3f] %vm270, %v990
    %v997 = vld [vmem:[#allocation3] sm:$0xff]
    %v998 = vld [vmem:[#allocation3 + $0x8] sm:$0xff]
    %v999 = vstv %s219
    %v1000 = vmul.f32 %v999, %v997
    %v1001 = vmul.f32 %v999, %v998
    %v1002 = vadd.f32 %v956, %v1000
    %v1003 = vadd.f32 %v957, %v1001
    %v1004 = vld [vmem:[#allocation3 + $0x1] sm:$0xff]
    %v1005 = vld [vmem:[#allocation3 + $0x9] sm:$0xff]
    %v1006 = vstv %s226
    %v1007 = vmul.f32 %v1006, %v1004
    %v1008 = vmul.f32 %v1006, %v1005
    %v1009 = vadd.f32 %v963, %v1007
    %v1010 = vadd.f32 %v964, %v1008
    %v1011 = vld [vmem:[#allocation3 + $0x2] sm:$0xff]
    %v1012 = vld [vmem:[#allocation3 + $0xa] sm:$0xff]
    %v1013 = vstv %s233
    %v1014 = vmul.f32 %v1013, %v1011
    %v1015 = vmul.f32 %v1013, %v1012
    %v1016 = vadd.f32 %v970, %v1014
    %v1017 = vadd.f32 %v971, %v1015
    %v1018 = vld [vmem:[#allocation3 + $0x3] sm:$0xff]
    %v1019 = vld [vmem:[#allocation3 + $0xb] sm:$0xff]
    %v1020 = vstv %s240
    %v1021 = vmul.f32 %v1020, %v1018
    %v1022 = vmul.f32 %v1020, %v1019
    %v1023 = vadd.f32 %v977, %v1021
    %v1024 = vadd.f32 %v978, %v1022
    %v1025 = vld [vmem:[#allocation3 + $0x4] sm:$0xff]
    %v1026 = vld [vmem:[#allocation3 + $0xc] sm:$0xff]
    %v1027 = vstv %s247
    %v1028 = vmul.f32 %v1027, %v1025
    %v1029 = vmul.f32 %v1027, %v1026
    %v1030 = vadd.f32 %v1002, %v1028
    %v1031 = vadd.f32 %v1003, %v1029
    %v1032 = vld [vmem:[#allocation3 + $0x5] sm:$0xff]
    %v1033 = vld [vmem:[#allocation3 + $0xd] sm:$0xff]
    %v1034 = vstv %s254
    %v1035 = vmul.f32 %v1034, %v1032
    %v1036 = vmul.f32 %v1034, %v1033
    %v1037 = vadd.f32 %v1009, %v1035
    %v1038 = vadd.f32 %v1010, %v1036
    %v1039 = vld [vmem:[#allocation3 + $0x6] sm:$0xff]
    %v1040 = vld [vmem:[#allocation3 + $0xe] sm:$0xff]
    %v1041 = vstv %s261
    %v1042 = vmul.f32 %v1041, %v1039
    %v1043 = vmul.f32 %v1041, %v1040
    %v1044 = vadd.f32 %v1016, %v1042
    %v1045 = vadd.f32 %v1017, %v1043
    %v1046 = vld [vmem:[%s103] sm:$0xff]
    %v1047 = vld [vmem:[%s103 + $0x8] sm:$0xff]
    %v1048 = vld [vmem:[%s103 + $0x10] sm:$0x3f]
    %1052 = vrot.lane.b32.xlu0 %v1046, 123
    %v1053 = vpop.permute.xlu0 %1052
    %1054 = vrot.lane.b32.xlu0 %v1047, 123
    %v1055 = vpop.permute.xlu0 %1054
    %1056 = vrot.lane.b32.xlu0 %v1048, 123
    %v1057 = vpop.permute.xlu0 %1056
    %1061 = vst.msk [vmem:[#allocation3] sm:$0xff] %vm267, %v1053
    %1062 = vst.msk [vmem:[#allocation3 + $0x8] sm:$0xff] %vm267, %v1055
    %1063 = vst.msk [vmem:[#allocation3 + $0x10] sm:$0x3f] %vm270, %v1057
    %v1064 = vld [vmem:[#allocation3] sm:$0xff]
    %v1065 = vld [vmem:[#allocation3 + $0x8] sm:$0xff]
    %v1066 = vstv %s220
    %v1067 = vmul.f32 %v1066, %v1064
    %v1068 = vmul.f32 %v1066, %v1065
    %v1069 = vadd.f32 %v1023, %v1067
    %v1070 = vadd.f32 %v1024, %v1068
    %v1071 = vld [vmem:[#allocation3 + $0x1] sm:$0xff]
    %v1072 = vld [vmem:[#allocation3 + $0x9] sm:$0xff]
    %v1073 = vstv %s227
    %v1074 = vmul.f32 %v1073, %v1071
    %v1075 = vmul.f32 %v1073, %v1072
    %v1076 = vadd.f32 %v1030, %v1074
    %v1077 = vadd.f32 %v1031, %v1075
    %v1078 = vld [vmem:[#allocation3 + $0x2] sm:$0xff]
    %v1079 = vld [vmem:[#allocation3 + $0xa] sm:$0xff]
    %v1080 = vstv %s234
    %v1081 = vmul.f32 %v1080, %v1078
    %v1082 = vmul.f32 %v1080, %v1079
    %v1083 = vadd.f32 %v1037, %v1081
    %v1084 = vadd.f32 %v1038, %v1082
    %v1085 = vld [vmem:[#allocation3 + $0x3] sm:$0xff]
    %v1086 = vld [vmem:[#allocation3 + $0xb] sm:$0xff]
    %v1087 = vstv %s241
    %v1088 = vmul.f32 %v1087, %v1085
    %v1089 = vmul.f32 %v1087, %v1086
    %v1090 = vadd.f32 %v1044, %v1088
    %v1091 = vadd.f32 %v1045, %v1089
    %v1092 = vld [vmem:[#allocation3 + $0x4] sm:$0xff]
    %v1093 = vld [vmem:[#allocation3 + $0xc] sm:$0xff]
    %v1094 = vstv %s248
    %v1095 = vmul.f32 %v1094, %v1092
    %v1096 = vmul.f32 %v1094, %v1093
    %v1097 = vadd.f32 %v1069, %v1095
    %v1098 = vadd.f32 %v1070, %v1096
    %v1099 = vld [vmem:[#allocation3 + $0x5] sm:$0xff]
    %v1100 = vld [vmem:[#allocation3 + $0xd] sm:$0xff]
    %v1101 = vstv %s255
    %v1102 = vmul.f32 %v1101, %v1099
    %v1103 = vmul.f32 %v1101, %v1100
    %v1104 = vadd.f32 %v1076, %v1102
    %v1105 = vadd.f32 %v1077, %v1103
    %v1106 = vld [vmem:[#allocation3 + $0x6] sm:$0xff]
    %v1107 = vld [vmem:[#allocation3 + $0xe] sm:$0xff]
    %v1108 = vstv %s262
    %v1109 = vmul.f32 %v1108, %v1106
    %v1110 = vmul.f32 %v1108, %v1107
    %v1111 = vadd.f32 %v1083, %v1109
    %v1112 = vadd.f32 %v1084, %v1110
    %v1113 = vld [vmem:[%s103] sm:$0xff]
    %v1114 = vld [vmem:[%s103 + $0x8] sm:$0xff]
    %v1115 = vld [vmem:[%s103 + $0x10] sm:$0x3f]
    %1119 = vrot.lane.b32.xlu0 %v1113, 122
    %v1120 = vpop.permute.xlu0 %1119
    %1121 = vrot.lane.b32.xlu0 %v1114, 122
    %v1122 = vpop.permute.xlu0 %1121
    %1123 = vrot.lane.b32.xlu0 %v1115, 122
    %v1124 = vpop.permute.xlu0 %1123
    %1128 = vst.msk [vmem:[#allocation3] sm:$0xff] %vm267, %v1120
    %1129 = vst.msk [vmem:[#allocation3 + $0x8] sm:$0xff] %vm267, %v1122
    %1130 = vst.msk [vmem:[#allocation3 + $0x10] sm:$0x3f] %vm270, %v1124
    %v1131 = vld [vmem:[#allocation3] sm:$0xff]
    %v1132 = vld [vmem:[#allocation3 + $0x8] sm:$0xff]
    %v1133 = vstv %s221
    %v1134 = vmul.f32 %v1133, %v1131
    %v1135 = vmul.f32 %v1133, %v1132
    %v1136 = vadd.f32 %v1090, %v1134
    %v1137 = vadd.f32 %v1091, %v1135
    %v1138 = vld [vmem:[#allocation3 + $0x1] sm:$0xff]
    %v1139 = vld [vmem:[#allocation3 + $0x9] sm:$0xff]
    %v1140 = vstv %s228
    %v1141 = vmul.f32 %v1140, %v1138
    %v1142 = vmul.f32 %v1140, %v1139
    %v1143 = vadd.f32 %v1097, %v1141
    %v1144 = vadd.f32 %v1098, %v1142
    %v1145 = vld [vmem:[#allocation3 + $0x2] sm:$0xff]
    %v1146 = vld [vmem:[#allocation3 + $0xa] sm:$0xff]
    %v1147 = vstv %s235
    %v1148 = vmul.f32 %v1147, %v1145
    %v1149 = vmul.f32 %v1147, %v1146
    %v1150 = vadd.f32 %v1104, %v1148
    %v1151 = vadd.f32 %v1105, %v1149
    %v1152 = vld [vmem:[#allocation3 + $0x3] sm:$0xff]
    %v1153 = vld [vmem:[#allocation3 + $0xb] sm:$0xff]
    %v1154 = vstv %s242
    %v1155 = vmul.f32 %v1154, %v1152
    %v1156 = vmul.f32 %v1154, %v1153
    %v1157 = vadd.f32 %v1111, %v1155
    %v1158 = vadd.f32 %v1112, %v1156
    %v1159 = vld [vmem:[#allocation3 + $0x4] sm:$0xff]
    %v1160 = vld [vmem:[#allocation3 + $0xc] sm:$0xff]
    %v1161 = vstv %s249
    %v1162 = vmul.f32 %v1161, %v1159
    %v1163 = vmul.f32 %v1161, %v1160
    %v1164 = vadd.f32 %v1136, %v1162
    %v1165 = vadd.f32 %v1137, %v1163
    %v1166 = vld [vmem:[#allocation3 + $0x5] sm:$0xff]
    %v1167 = vld [vmem:[#allocation3 + $0xd] sm:$0xff]
    %v1168 = vstv %s256
    %v1169 = vmul.f32 %v1168, %v1166
    %v1170 = vmul.f32 %v1168, %v1167
    %v1171 = vadd.f32 %v1143, %v1169
    %v1172 = vadd.f32 %v1144, %v1170
    %v1173 = vld [vmem:[#allocation3 + $0x6] sm:$0xff]
    %v1174 = vld [vmem:[#allocation3 + $0xe] sm:$0xff]
    %v1175 = vstv %s263
    %v1176 = vmul.f32 %v1175, %v1173
    %v1177 = vmul.f32 %v1175, %v1174
    %v1178 = vadd.f32 %v1150, %v1176
    %v1179 = vadd.f32 %v1151, %v1177
    %v1180 = vadd.f32 %v1171, %v1178
    %v1181 = vadd.f32 %v1172, %v1179
    %v1182 = vadd.f32 %v1180, %v1157
    %v1183 = vadd.f32 %v1181, %v1158
    %v1184 = vadd.f32 %v1182, %v1164
    %v1185 = vadd.f32 %v1183, %v1165
    %v1186 = vsub.f32 0.0, %v1184
    %v1187 = vsub.f32 0.0, %v1185
    %v1188 = vmul.f32 %v1186, 1.442695
    %v1189 = vpow.pop %v1188
    %v1190 = vmul.f32 %v1187, 1.442695
    %v1191 = vpow.pop %v1190
    %v1192 = vadd.f32 %v1189, 1.0
    %v1193 = vadd.f32 %v1191, 1.0
    %v1194 = vrcp.pop %v1192
    %v1195 = vrcp.pop %v1193
    %1196 = vst.msk [vmem:[#allocation9] sm:$0xff] %vm267, %v1194
    %1197 = vst.msk [vmem:[#allocation9 + $0x8] sm:$0xff] %vm267, %v1195
    // Predicated region
    $region18: #{tpu_custom_call.1} parent=1 // pred_check
      _
    $region19: #{tpu_custom_call.1} parent=1 // pred_check_branch
      %1199 = sbr.rel (0) target = $region21
    $region20: #{tpu_custom_call.1} parent=1 // pred_region
      %s1201 = ssub.s32 256, 256
      %1202 = vsyncadd [#allocation6], %s1201
      %s1203 = sshll.u32 [#allocation9], 4
      %s1204 = int_to_ptr.vmem [resolvable:$true] %s1203
      %1209 = dma.vmem_to_hbm [thread:$0]  %s1204, 256, %s2, [#allocation6], 128, 128, 8
    $region21: #{tpu_custom_call.1} parent=1 // pred_fallthru
      _
    // Predicated region
    $region22: #{tpu_custom_call.1} parent=1 // pred_check
      _
    $region23: #{tpu_custom_call.1} parent=1 // pred_check_branch
      %1211 = sbr.rel (0) target = $region25
    $region24: #{tpu_custom_call.1} parent=1 // pred_region
      %1212 = dma.done [#allocation6], 256
    $region25: #{tpu_custom_call.1} parent=1 // pred_fallthru
      _
    %1213 = vsyncpa [#allocation5], 1
    %1214 = vsyncpa [#allocation6], 1
    %1215 = vsyncpa [#allocation7], 1

</llo_original>
